<compile_context>
chip_gen: v7x
topology: tpu7x:2x2x1
jax: 0.10.0
libtpu: 0.0.40
codegen_flags: <defaults>
</compile_context>

<pallas_src>
import jax
import jax.numpy as jnp
from jax import lax
from jax.experimental import pallas as pl
from jax.experimental.pallas import tpu as pltpu


HIDDEN = 20          # hidden_size from the module
HIDDEN_PAD = 32      # padded hidden size: 4*HP = 128 lanes, 32-aligned gate slices
INPUT_SIZE = 1       # input_size from the module
NUM_LAYERS = 2       # num_stacked_layers from the module


def _ensemble_kernel(xp_ref, w_rec0_ref, w1_ref, b1_ref, fc_w_ref, fc_b_ref, out_ref):
    T, B, G5 = xp_ref.shape
    Hp = G5 // 5
    f32 = jnp.float32

    # Tiny weights: load once, outside the recurrence.
    w_rec0 = w_rec0_ref[...]                              # (2Hp, 5Hp)
    w1 = w1_ref[...]                                      # (4Hp, 5Hp)
    b1 = jnp.broadcast_to(b1_ref[...], (B, G5))           # hoisted bias broadcast
    fc_w = fc_w_ref[...]                                  # (2Hp, 1)  (0.5 folded in)
    fc_b = fc_b_ref[...]                                  # (1, 1)

    def activate(pre):
        # lane layout: [ i | f | o | g | rnn ]  -> 1 sigmoid + 1 tanh per level
        sig = jax.nn.sigmoid(pre[:, :3 * Hp])
        tnh = jnp.tanh(pre[:, 3 * Hp:])
        i = sig[:, 0 * Hp:1 * Hp]
        f = sig[:, 1 * Hp:2 * Hp]
        o = sig[:, 2 * Hp:3 * Hp]
        g = tnh[:, 0 * Hp:1 * Hp]
        r = tnh[:, 1 * Hp:2 * Hp]
        return i, f, o, g, r

    def step(t, carry):
        s0, lc0, s1, lc1 = carry                          # s* = [lstm_h | rnn_h]
        # ---- level 0: LSTM0 + RNN0 in ONE fused recurrent dot.
        # x @ W_ih (K=1) and both layer-0 fused biases are precomputed in xp_ref.
        pre0 = xp_ref[t] + jnp.dot(s0, w_rec0, preferred_element_type=f32)
        i0, f0, o0, g0, r0 = activate(pre0)
        lc0 = f0 * lc0 + i0 * g0
        lh0 = o0 * jnp.tanh(lc0)
        s0 = jnp.concatenate([lh0, r0], axis=1)           # (B, 2Hp)
        # ---- level 1: input + recurrent matmuls of both models in ONE dot.
        pre1 = jnp.dot(jnp.concatenate([s0, s1], axis=1), w1,
                       preferred_element_type=f32) + b1
        i1, f1, o1, g1, r1 = activate(pre1)
        lc1 = f1 * lc1 + i1 * g1
        lh1 = o1 * jnp.tanh(lc1)
        s1 = jnp.concatenate([lh1, r1], axis=1)           # (B, 2Hp)
        return s0, lc0, s1, lc1

    zeros_s = jnp.zeros((B, 2 * Hp), f32)
    zeros_c = jnp.zeros((B, Hp), f32)
    _, _, s1, _ = lax.fori_loop(0, T, step, (zeros_s, zeros_c, zeros_s, zeros_c),
                                unroll=True)

    # s1 == [lstm top hidden | rnn top hidden]; both fc heads + the 0.5 ensemble
    # average are fused into fc_w / fc_b.
    out = jnp.dot(s1, fc_w, preferred_element_type=f32) + fc_b
    out_ref[...] = jnp.maximum(out, 0.0)                  # F.relu


def _reorder_ifgo_to_ifog(w):
    """Reorder PyTorch LSTM gate blocks (i,f,g,o) -> (i,f,o,g) along axis 0."""
    i, f, g, o = jnp.split(w, 4, axis=0)
    return jnp.concatenate([i, f, o, g], axis=0)


def _pad_rows_per_gate(w, h, hp, n_gates):
    """Pad each of the n_gates row blocks from h to hp rows with zeros."""
    blocks = jnp.split(w, n_gates, axis=0)
    pad_cfg = ((0, hp - h),) + ((0, 0),) * (w.ndim - 1)
    return jnp.concatenate([jnp.pad(b, pad_cfg) for b in blocks], axis=0)


def _uniform(key, shape, bound):
    return jax.random.uniform(key, shape, jnp.float32, minval=-bound, maxval=bound)


def init_params(key, input_size=INPUT_SIZE, hidden=HIDDEN):
    """Deterministic init mirroring nn.LSTM / nn.RNN / nn.Linear shapes."""
    bound = 1.0 / jnp.sqrt(hidden)
    keys = jax.random.split(key, 32)
    k = iter(keys)
    p = {}
    for layer, in_dim in ((0, input_size), (1, hidden)):
        p[f"l_wih{layer}"] = _uniform(next(k), (4 * hidden, in_dim), bound)
        p[f"l_whh{layer}"] = _uniform(next(k), (4 * hidden, hidden), bound)
        p[f"l_bih{layer}"] = _uniform(next(k), (4 * hidden,), bound)
        p[f"l_bhh{layer}"] = _uniform(next(k), (4 * hidden,), bound)
    for layer, in_dim in ((0, input_size), (1, hidden)):
        p[f"r_wih{layer}"] = _uniform(next(k), (hidden, in_dim), bound)
        p[f"r_whh{layer}"] = _uniform(next(k), (hidden, hidden), bound)
        p[f"r_bih{layer}"] = _uniform(next(k), (hidden,), bound)
        p[f"r_bhh{layer}"] = _uniform(next(k), (hidden,), bound)
    p["fcl_w"] = _uniform(next(k), (1, hidden), bound)
    p["fcl_b"] = _uniform(next(k), (1,), bound)
    p["fcr_w"] = _uniform(next(k), (1, hidden), bound)
    p["fcr_b"] = _uniform(next(k), (1,), bound)
    return p


@jax.jit
def ensemble_forward(x, params):
    """x: (B, T, I) batch-first, like the PyTorch module."""
    B, T, I = x.shape
    H, Hp = HIDDEN, HIDDEN_PAD
    f32 = jnp.float32
    x_tm = jnp.transpose(x, (1, 0, 2)).astype(f32)        # (T, B, 1)

    def lstm_prep(wih, whh, bih, bhh):
        # reorder gate rows, zero-pad each gate block H->Hp, pad hidden columns.
        wih = _pad_rows_per_gate(_reorder_ifgo_to_ifog(wih), H, Hp, 4)
        if wih.shape[1] == H:
            wih = jnp.pad(wih, ((0, 0), (0, Hp - H)))
        whh = _pad_rows_per_gate(_reorder_ifgo_to_ifog(whh), H, Hp, 4)
        whh = jnp.pad(whh, ((0, 0), (0, Hp - H)))
        b = _pad_rows_per_gate(_reorder_ifgo_to_ifog(bih + bhh), H, Hp, 4)
        return wih, whh, b

    def rnn_prep(wih, whh, bih, bhh):
        wih = jnp.pad(wih, ((0, Hp - H), (0, 0)))
        if wih.shape[1] == H:
            wih = jnp.pad(wih, ((0, 0), (0, Hp - H)))
        whh = jnp.pad(whh, ((0, Hp - H), (0, Hp - H)))
        b = jnp.pad(bih + bhh, (0, Hp - H))
        return wih, whh, b

    l_wih0, l_whh0, l_b0 = lstm_prep(params["l_wih0"], params["l_whh0"],
                                     params["l_bih0"], params["l_bhh0"])
    l_wih1, l_whh1, l_b1 = lstm_prep(params["l_wih1"], params["l_whh1"],
                                     params["l_bih1"], params["l_bhh1"])
    r_wih0, r_whh0, r_b0 = rnn_prep(params["r_wih0"], params["r_whh0"],
                                    params["r_bih0"], params["r_bhh0"])
    r_wih1, r_whh1, r_b1 = rnn_prep(params["r_wih1"], params["r_whh1"],
                                    params["r_bih1"], params["r_bhh1"])

    G4 = 4 * Hp

    # Precompute layer-0 input projections (K=1 matmul == broadcast multiply),
    # folding in the fused layer-0 biases: (T, B, 5Hp).
    xp_lstm = x_tm * l_wih0[:, 0][None, None, :] + l_b0[None, None, :]
    xp_rnn = x_tm * r_wih0[:, 0][None, None, :] + r_b0[None, None, :]
    xp = jnp.concatenate([xp_lstm, xp_rnn], axis=-1)

    zHH = jnp.zeros((Hp, Hp), f32)
    zH4 = jnp.zeros((Hp, G4), f32)

    # Fused block-diagonal level-0 recurrent weight: [lh0 | rh0] -> [gates | rnn]
    w_rec0 = jnp.concatenate([
        jnp.concatenate([l_whh0.T, zHH], axis=1),
        jnp.concatenate([zH4, r_whh0.T], axis=1),
    ], axis=0)                                            # (2Hp, 5Hp)

    # Fused level-1 weight: [lh0 | rh0 | lh1 | rh1] -> [gates | rnn]
    w1 = jnp.concatenate([
        jnp.concatenate([l_wih1.T, zHH], axis=1),
        jnp.concatenate([zH4, r_wih1.T], axis=1),
        jnp.concatenate([l_whh1.T, zHH], axis=1),
        jnp.concatenate([zH4, r_whh1.T], axis=1),
    ], axis=0)                                            # (4Hp, 5Hp)

    b1 = jnp.concatenate([l_b1, r_b1])[None, :]           # (1, 5Hp)

    # Fused fc heads with the 0.5 ensemble average folded in.
    fcl_w = jnp.pad(params["fcl_w"].T, ((0, Hp - H), (0, 0)))    # (Hp, 1)
    fcr_w = jnp.pad(params["fcr_w"].T, ((0, Hp - H), (0, 0)))
    fc_w = jnp.concatenate([fcl_w, fcr_w], axis=0) * 0.5         # (2Hp, 1)
    fc_b = ((params["fcl_b"] + params["fcr_b"]) * 0.5)[None, :]  # (1, 1)

    inputs = (xp, w_rec0, w1, b1, fc_w, fc_b)
    vmem = pl.BlockSpec(memory_space=pltpu.MemorySpace.VMEM)

    return pl.pallas_call(
        _ensemble_kernel,
        out_shape=jax.ShapeDtypeStruct((B, 1), jnp.float32),
        in_specs=[vmem] * len(inputs),
        out_specs=vmem,
    )(*inputs)


def _reference_forward(x, params):
    """Pure-JAX reference matching the PyTorch EnsembleModel forward."""
    B, T, I = x.shape
    H = HIDDEN

    def lstm_layer(seq, wih, whh, bih, bhh):
        def cell(carry, x_t):
            h, c = carry
            gates = x_t @ wih.T + bih + h @ whh.T + bhh
            i, f, g, o = jnp.split(gates, 4, axis=-1)
            c = jax.nn.sigmoid(f) * c + jax.nn.sigmoid(i) * jnp.tanh(g)
            h = jax.nn.sigmoid(o) * jnp.tanh(c)
            return (h, c), h
        _, ys = lax.scan(cell, (jnp.zeros((B, H)), jnp.zeros((B, H))),
                         jnp.transpose(seq, (1, 0, 2)))
        return jnp.transpose(ys, (1, 0, 2))

    def rnn_layer(seq, wih, whh, bih, bhh):
        def cell(h, x_t):
            h = jnp.tanh(x_t @ wih.T + bih + h @ whh.T + bhh)
            return h, h
        _, ys = lax.scan(cell, jnp.zeros((B, H)), jnp.transpose(seq, (1, 0, 2)))
        return jnp.transpose(ys, (1, 0, 2))

    y = lstm_layer(x, params["l_wih0"], params["l_whh0"], params["l_bih0"], params["l_bhh0"])
    y = lstm_layer(y, params["l_wih1"], params["l_whh1"], params["l_bih1"], params["l_bhh1"])
    lstm_out = y[:, -1, :] @ params["fcl_w"].T + params["fcl_b"]

    z = rnn_layer(x, params["r_wih0"], params["r_whh0"], params["r_bih0"], params["r_bhh0"])
    z = rnn_layer(z, params["r_wih1"], params["r_whh1"], params["r_bih1"], params["r_bhh1"])
    rnn_out = z[:, -1, :] @ params["fcr_w"].T + params["fcr_b"]

    return jax.nn.relu((rnn_out + lstm_out) / 2)


if __name__ == "__main__":
    key = jax.random.PRNGKey(0)
    k_params, k_x = jax.random.split(key)
    params = init_params(k_params)

    B, T, I = 2, 8, INPUT_SIZE
    x = jax.random.normal(k_x, (B, T, I), jnp.float32)

    out = ensemble_forward(x, params)
    jax.block_until_ready(out)

    ref = _reference_forward(x, params)
    assert out.shape == (B, 1), out.shape
    assert jnp.allclose(out, ref, atol=1e-4, rtol=1e-4), (out, ref)
    print("KERNEL_OK")
</pallas_src>

<mosaic_0001>
module attributes {stable_mosaic.version = 11 : i64} {
  func.func @_ensemble_kernel(%arg0: memref<8x2x160xf32, #tpu.memory_space<vmem>>, %arg1: memref<64x160xf32, #tpu.memory_space<vmem>>, %arg2: memref<128x160xf32, #tpu.memory_space<vmem>>, %arg3: memref<1x160xf32, #tpu.memory_space<vmem>>, %arg4: memref<64x1xf32, #tpu.memory_space<vmem>>, %arg5: memref<1x1xf32, #tpu.memory_space<vmem>>, %arg6: memref<2x1xf32, #tpu.memory_space<vmem>>) attributes {dimension_semantics = [], scalar_prefetch = 0 : i64, scratch_operands = 0 : i64, tpu.core_type = #tpu.core_type<tc>} {
    %c0 = arith.constant 0 : index
    %c0_0 = arith.constant 0 : index
    %0 = vector.load %arg1[%c0, %c0_0] : memref<64x160xf32, #tpu.memory_space<vmem>>, vector<64x160xf32>
    %c0_1 = arith.constant 0 : index
    %c0_2 = arith.constant 0 : index
    %1 = vector.load %arg2[%c0_1, %c0_2] : memref<128x160xf32, #tpu.memory_space<vmem>>, vector<128x160xf32>
    %c0_3 = arith.constant 0 : index
    %c0_4 = arith.constant 0 : index
    %2 = vector.load %arg3[%c0_3, %c0_4] : memref<1x160xf32, #tpu.memory_space<vmem>>, vector<1x160xf32>
    %3 = vector.shape_cast %2 : vector<1x160xf32> to vector<1x160xf32>
    %4 = vector.broadcast %3 : vector<1x160xf32> to vector<2x160xf32>
    %c0_5 = arith.constant 0 : index
    %c0_6 = arith.constant 0 : index
    %5 = vector.load %arg4[%c0_5, %c0_6] : memref<64x1xf32, #tpu.memory_space<vmem>>, vector<64x1xf32>
    %c0_7 = arith.constant 0 : index
    %c0_8 = arith.constant 0 : index
    %6 = vector.load %arg5[%c0_7, %c0_8] : memref<1x1xf32, #tpu.memory_space<vmem>>, vector<1x1xf32>
    %cst = arith.constant 0.000000e+00 : f32
    %7 = vector.broadcast %cst : f32 to vector<2x64xf32>
    %cst_9 = arith.constant 0.000000e+00 : f32
    %8 = vector.broadcast %cst_9 : f32 to vector<2x32xf32>
    %c0_i32 = arith.constant 0 : i32
    %9 = arith.index_cast %c0_i32 : i32 to index
    %c0_10 = arith.constant 0 : index
    %c0_11 = arith.constant 0 : index
    %10 = vector.load %arg0[%9, %c0_10, %c0_11] : memref<8x2x160xf32, #tpu.memory_space<vmem>>, vector<1x2x160xf32>
    %11 = vector.shape_cast %10 : vector<1x2x160xf32> to vector<2x160xf32>
    %cst_12 = arith.constant dense<0.000000e+00> : vector<2x160xf32>
    %12 = tpu.matmul %7, %0, %cst_12 {dimension_numbers = #tpu.dot_dimension_numbers<[1], [0], [0], [1], [0, 0, 1, 1], [], []>} : vector<2x64xf32>, vector<64x160xf32>, vector<2x160xf32> -> vector<2x160xf32>
    %13 = arith.addf %11, %12 : vector<2x160xf32>
    %14 = vector.extract_strided_slice %13 {offsets = [0, 0], sizes = [2, 96], strides = [1, 1]} : vector<2x160xf32> to vector<2x96xf32>
    %15 = arith.negf %14 : vector<2x96xf32>
    %16 = math.exp %15 : vector<2x96xf32>
    %cst_13 = arith.constant 1.000000e+00 : f32
    %17 = vector.broadcast %cst_13 : f32 to vector<2x96xf32>
    %18 = arith.addf %17, %16 : vector<2x96xf32>
    %19 = arith.divf %17, %18 : vector<2x96xf32>
    %20 = vector.extract_strided_slice %13 {offsets = [0, 96], sizes = [2, 64], strides = [1, 1]} : vector<2x160xf32> to vector<2x64xf32>
    %21 = math.tanh %20 : vector<2x64xf32>
    %22 = vector.extract_strided_slice %19 {offsets = [0, 0], sizes = [2, 32], strides = [1, 1]} : vector<2x96xf32> to vector<2x32xf32>
    %23 = vector.extract_strided_slice %19 {offsets = [0, 32], sizes = [2, 32], strides = [1, 1]} : vector<2x96xf32> to vector<2x32xf32>
    %24 = vector.extract_strided_slice %19 {offsets = [0, 64], sizes = [2, 32], strides = [1, 1]} : vector<2x96xf32> to vector<2x32xf32>
    %25 = vector.extract_strided_slice %21 {offsets = [0, 0], sizes = [2, 32], strides = [1, 1]} : vector<2x64xf32> to vector<2x32xf32>
    %26 = vector.extract_strided_slice %21 {offsets = [0, 32], sizes = [2, 32], strides = [1, 1]} : vector<2x64xf32> to vector<2x32xf32>
    %27 = arith.mulf %23, %8 : vector<2x32xf32>
    %28 = arith.mulf %22, %25 : vector<2x32xf32>
    %29 = arith.addf %27, %28 : vector<2x32xf32>
    %30 = math.tanh %29 : vector<2x32xf32>
    %31 = arith.mulf %24, %30 : vector<2x32xf32>
    %32 = tpu.concatenate %31, %26 in 1 : vector<2x32xf32>, vector<2x32xf32> -> vector<2x64xf32>
    %33 = tpu.concatenate %32, %7 in 1 : vector<2x64xf32>, vector<2x64xf32> -> vector<2x128xf32>
    %cst_14 = arith.constant dense<0.000000e+00> : vector<2x160xf32>
    %34 = tpu.matmul %33, %1, %cst_14 {dimension_numbers = #tpu.dot_dimension_numbers<[1], [0], [0], [1], [0, 0, 1, 1], [], []>} : vector<2x128xf32>, vector<128x160xf32>, vector<2x160xf32> -> vector<2x160xf32>
    %35 = arith.addf %34, %4 : vector<2x160xf32>
    %36 = vector.extract_strided_slice %35 {offsets = [0, 0], sizes = [2, 96], strides = [1, 1]} : vector<2x160xf32> to vector<2x96xf32>
    %37 = arith.negf %36 : vector<2x96xf32>
    %38 = math.exp %37 : vector<2x96xf32>
    %cst_15 = arith.constant 1.000000e+00 : f32
    %39 = vector.broadcast %cst_15 : f32 to vector<2x96xf32>
    %40 = arith.addf %39, %38 : vector<2x96xf32>
    %41 = arith.divf %39, %40 : vector<2x96xf32>
    %42 = vector.extract_strided_slice %35 {offsets = [0, 96], sizes = [2, 64], strides = [1, 1]} : vector<2x160xf32> to vector<2x64xf32>
    %43 = math.tanh %42 : vector<2x64xf32>
    %44 = vector.extract_strided_slice %41 {offsets = [0, 0], sizes = [2, 32], strides = [1, 1]} : vector<2x96xf32> to vector<2x32xf32>
    %45 = vector.extract_strided_slice %41 {offsets = [0, 32], sizes = [2, 32], strides = [1, 1]} : vector<2x96xf32> to vector<2x32xf32>
    %46 = vector.extract_strided_slice %41 {offsets = [0, 64], sizes = [2, 32], strides = [1, 1]} : vector<2x96xf32> to vector<2x32xf32>
    %47 = vector.extract_strided_slice %43 {offsets = [0, 0], sizes = [2, 32], strides = [1, 1]} : vector<2x64xf32> to vector<2x32xf32>
    %48 = vector.extract_strided_slice %43 {offsets = [0, 32], sizes = [2, 32], strides = [1, 1]} : vector<2x64xf32> to vector<2x32xf32>
    %49 = arith.mulf %45, %8 : vector<2x32xf32>
    %50 = arith.mulf %44, %47 : vector<2x32xf32>
    %51 = arith.addf %49, %50 : vector<2x32xf32>
    %52 = math.tanh %51 : vector<2x32xf32>
    %53 = arith.mulf %46, %52 : vector<2x32xf32>
    %54 = tpu.concatenate %53, %48 in 1 : vector<2x32xf32>, vector<2x32xf32> -> vector<2x64xf32>
    %c1_i32 = arith.constant 1 : i32
    %55 = arith.index_cast %c1_i32 : i32 to index
    %c0_16 = arith.constant 0 : index
    %c0_17 = arith.constant 0 : index
    %56 = vector.load %arg0[%55, %c0_16, %c0_17] : memref<8x2x160xf32, #tpu.memory_space<vmem>>, vector<1x2x160xf32>
    %57 = vector.shape_cast %56 : vector<1x2x160xf32> to vector<2x160xf32>
    %cst_18 = arith.constant dense<0.000000e+00> : vector<2x160xf32>
    %58 = tpu.matmul %32, %0, %cst_18 {dimension_numbers = #tpu.dot_dimension_numbers<[1], [0], [0], [1], [0, 0, 1, 1], [], []>} : vector<2x64xf32>, vector<64x160xf32>, vector<2x160xf32> -> vector<2x160xf32>
    %59 = arith.addf %57, %58 : vector<2x160xf32>
    %60 = vector.extract_strided_slice %59 {offsets = [0, 0], sizes = [2, 96], strides = [1, 1]} : vector<2x160xf32> to vector<2x96xf32>
    %61 = arith.negf %60 : vector<2x96xf32>
    %62 = math.exp %61 : vector<2x96xf32>
    %cst_19 = arith.constant 1.000000e+00 : f32
    %63 = vector.broadcast %cst_19 : f32 to vector<2x96xf32>
    %64 = arith.addf %63, %62 : vector<2x96xf32>
    %65 = arith.divf %63, %64 : vector<2x96xf32>
    %66 = vector.extract_strided_slice %59 {offsets = [0, 96], sizes = [2, 64], strides = [1, 1]} : vector<2x160xf32> to vector<2x64xf32>
    %67 = math.tanh %66 : vector<2x64xf32>
    %68 = vector.extract_strided_slice %65 {offsets = [0, 0], sizes = [2, 32], strides = [1, 1]} : vector<2x96xf32> to vector<2x32xf32>
    %69 = vector.extract_strided_slice %65 {offsets = [0, 32], sizes = [2, 32], strides = [1, 1]} : vector<2x96xf32> to vector<2x32xf32>
    %70 = vector.extract_strided_slice %65 {offsets = [0, 64], sizes = [2, 32], strides = [1, 1]} : vector<2x96xf32> to vector<2x32xf32>
    %71 = vector.extract_strided_slice %67 {offsets = [0, 0], sizes = [2, 32], strides = [1, 1]} : vector<2x64xf32> to vector<2x32xf32>
    %72 = vector.extract_strided_slice %67 {offsets = [0, 32], sizes = [2, 32], strides = [1, 1]} : vector<2x64xf32> to vector<2x32xf32>
    %73 = arith.mulf %69, %29 : vector<2x32xf32>
    %74 = arith.mulf %68, %71 : vector<2x32xf32>
    %75 = arith.addf %73, %74 : vector<2x32xf32>
    %76 = math.tanh %75 : vector<2x32xf32>
    %77 = arith.mulf %70, %76 : vector<2x32xf32>
    %78 = tpu.concatenate %77, %72 in 1 : vector<2x32xf32>, vector<2x32xf32> -> vector<2x64xf32>
    %79 = tpu.concatenate %78, %54 in 1 : vector<2x64xf32>, vector<2x64xf32> -> vector<2x128xf32>
    %cst_20 = arith.constant dense<0.000000e+00> : vector<2x160xf32>
    %80 = tpu.matmul %79, %1, %cst_20 {dimension_numbers = #tpu.dot_dimension_numbers<[1], [0], [0], [1], [0, 0, 1, 1], [], []>} : vector<2x128xf32>, vector<128x160xf32>, vector<2x160xf32> -> vector<2x160xf32>
    %81 = arith.addf %80, %4 : vector<2x160xf32>
    %82 = vector.extract_strided_slice %81 {offsets = [0, 0], sizes = [2, 96], strides = [1, 1]} : vector<2x160xf32> to vector<2x96xf32>
    %83 = arith.negf %82 : vector<2x96xf32>
    %84 = math.exp %83 : vector<2x96xf32>
    %cst_21 = arith.constant 1.000000e+00 : f32
    %85 = vector.broadcast %cst_21 : f32 to vector<2x96xf32>
    %86 = arith.addf %85, %84 : vector<2x96xf32>
    %87 = arith.divf %85, %86 : vector<2x96xf32>
    %88 = vector.extract_strided_slice %81 {offsets = [0, 96], sizes = [2, 64], strides = [1, 1]} : vector<2x160xf32> to vector<2x64xf32>
    %89 = math.tanh %88 : vector<2x64xf32>
    %90 = vector.extract_strided_slice %87 {offsets = [0, 0], sizes = [2, 32], strides = [1, 1]} : vector<2x96xf32> to vector<2x32xf32>
    %91 = vector.extract_strided_slice %87 {offsets = [0, 32], sizes = [2, 32], strides = [1, 1]} : vector<2x96xf32> to vector<2x32xf32>
    %92 = vector.extract_strided_slice %87 {offsets = [0, 64], sizes = [2, 32], strides = [1, 1]} : vector<2x96xf32> to vector<2x32xf32>
    %93 = vector.extract_strided_slice %89 {offsets = [0, 0], sizes = [2, 32], strides = [1, 1]} : vector<2x64xf32> to vector<2x32xf32>
    %94 = vector.extract_strided_slice %89 {offsets = [0, 32], sizes = [2, 32], strides = [1, 1]} : vector<2x64xf32> to vector<2x32xf32>
    %95 = arith.mulf %91, %51 : vector<2x32xf32>
    %96 = arith.mulf %90, %93 : vector<2x32xf32>
    %97 = arith.addf %95, %96 : vector<2x32xf32>
    %98 = math.tanh %97 : vector<2x32xf32>
    %99 = arith.mulf %92, %98 : vector<2x32xf32>
    %100 = tpu.concatenate %99, %94 in 1 : vector<2x32xf32>, vector<2x32xf32> -> vector<2x64xf32>
    %c2_i32 = arith.constant 2 : i32
    %101 = arith.index_cast %c2_i32 : i32 to index
    %c0_22 = arith.constant 0 : index
    %c0_23 = arith.constant 0 : index
    %102 = vector.load %arg0[%101, %c0_22, %c0_23] : memref<8x2x160xf32, #tpu.memory_space<vmem>>, vector<1x2x160xf32>
    %103 = vector.shape_cast %102 : vector<1x2x160xf32> to vector<2x160xf32>
    %cst_24 = arith.constant dense<0.000000e+00> : vector<2x160xf32>
    %104 = tpu.matmul %78, %0, %cst_24 {dimension_numbers = #tpu.dot_dimension_numbers<[1], [0], [0], [1], [0, 0, 1, 1], [], []>} : vector<2x64xf32>, vector<64x160xf32>, vector<2x160xf32> -> vector<2x160xf32>
    %105 = arith.addf %103, %104 : vector<2x160xf32>
    %106 = vector.extract_strided_slice %105 {offsets = [0, 0], sizes = [2, 96], strides = [1, 1]} : vector<2x160xf32> to vector<2x96xf32>
    %107 = arith.negf %106 : vector<2x96xf32>
    %108 = math.exp %107 : vector<2x96xf32>
    %cst_25 = arith.constant 1.000000e+00 : f32
    %109 = vector.broadcast %cst_25 : f32 to vector<2x96xf32>
    %110 = arith.addf %109, %108 : vector<2x96xf32>
    %111 = arith.divf %109, %110 : vector<2x96xf32>
    %112 = vector.extract_strided_slice %105 {offsets = [0, 96], sizes = [2, 64], strides = [1, 1]} : vector<2x160xf32> to vector<2x64xf32>
    %113 = math.tanh %112 : vector<2x64xf32>
    %114 = vector.extract_strided_slice %111 {offsets = [0, 0], sizes = [2, 32], strides = [1, 1]} : vector<2x96xf32> to vector<2x32xf32>
    %115 = vector.extract_strided_slice %111 {offsets = [0, 32], sizes = [2, 32], strides = [1, 1]} : vector<2x96xf32> to vector<2x32xf32>
    %116 = vector.extract_strided_slice %111 {offsets = [0, 64], sizes = [2, 32], strides = [1, 1]} : vector<2x96xf32> to vector<2x32xf32>
    %117 = vector.extract_strided_slice %113 {offsets = [0, 0], sizes = [2, 32], strides = [1, 1]} : vector<2x64xf32> to vector<2x32xf32>
    %118 = vector.extract_strided_slice %113 {offsets = [0, 32], sizes = [2, 32], strides = [1, 1]} : vector<2x64xf32> to vector<2x32xf32>
    %119 = arith.mulf %115, %75 : vector<2x32xf32>
    %120 = arith.mulf %114, %117 : vector<2x32xf32>
    %121 = arith.addf %119, %120 : vector<2x32xf32>
    %122 = math.tanh %121 : vector<2x32xf32>
    %123 = arith.mulf %116, %122 : vector<2x32xf32>
    %124 = tpu.concatenate %123, %118 in 1 : vector<2x32xf32>, vector<2x32xf32> -> vector<2x64xf32>
    %125 = tpu.concatenate %124, %100 in 1 : vector<2x64xf32>, vector<2x64xf32> -> vector<2x128xf32>
    %cst_26 = arith.constant dense<0.000000e+00> : vector<2x160xf32>
    %126 = tpu.matmul %125, %1, %cst_26 {dimension_numbers = #tpu.dot_dimension_numbers<[1], [0], [0], [1], [0, 0, 1, 1], [], []>} : vector<2x128xf32>, vector<128x160xf32>, vector<2x160xf32> -> vector<2x160xf32>
    %127 = arith.addf %126, %4 : vector<2x160xf32>
    %128 = vector.extract_strided_slice %127 {offsets = [0, 0], sizes = [2, 96], strides = [1, 1]} : vector<2x160xf32> to vector<2x96xf32>
    %129 = arith.negf %128 : vector<2x96xf32>
    %130 = math.exp %129 : vector<2x96xf32>
    %cst_27 = arith.constant 1.000000e+00 : f32
    %131 = vector.broadcast %cst_27 : f32 to vector<2x96xf32>
    %132 = arith.addf %131, %130 : vector<2x96xf32>
    %133 = arith.divf %131, %132 : vector<2x96xf32>
    %134 = vector.extract_strided_slice %127 {offsets = [0, 96], sizes = [2, 64], strides = [1, 1]} : vector<2x160xf32> to vector<2x64xf32>
    %135 = math.tanh %134 : vector<2x64xf32>
    %136 = vector.extract_strided_slice %133 {offsets = [0, 0], sizes = [2, 32], strides = [1, 1]} : vector<2x96xf32> to vector<2x32xf32>
    %137 = vector.extract_strided_slice %133 {offsets = [0, 32], sizes = [2, 32], strides = [1, 1]} : vector<2x96xf32> to vector<2x32xf32>
    %138 = vector.extract_strided_slice %133 {offsets = [0, 64], sizes = [2, 32], strides = [1, 1]} : vector<2x96xf32> to vector<2x32xf32>
    %139 = vector.extract_strided_slice %135 {offsets = [0, 0], sizes = [2, 32], strides = [1, 1]} : vector<2x64xf32> to vector<2x32xf32>
    %140 = vector.extract_strided_slice %135 {offsets = [0, 32], sizes = [2, 32], strides = [1, 1]} : vector<2x64xf32> to vector<2x32xf32>
    %141 = arith.mulf %137, %97 : vector<2x32xf32>
    %142 = arith.mulf %136, %139 : vector<2x32xf32>
    %143 = arith.addf %141, %142 : vector<2x32xf32>
    %144 = math.tanh %143 : vector<2x32xf32>
    %145 = arith.mulf %138, %144 : vector<2x32xf32>
    %146 = tpu.concatenate %145, %140 in 1 : vector<2x32xf32>, vector<2x32xf32> -> vector<2x64xf32>
    %c3_i32 = arith.constant 3 : i32
    %147 = arith.index_cast %c3_i32 : i32 to index
    %c0_28 = arith.constant 0 : index
    %c0_29 = arith.constant 0 : index
    %148 = vector.load %arg0[%147, %c0_28, %c0_29] : memref<8x2x160xf32, #tpu.memory_space<vmem>>, vector<1x2x160xf32>
    %149 = vector.shape_cast %148 : vector<1x2x160xf32> to vector<2x160xf32>
    %cst_30 = arith.constant dense<0.000000e+00> : vector<2x160xf32>
    %150 = tpu.matmul %124, %0, %cst_30 {dimension_numbers = #tpu.dot_dimension_numbers<[1], [0], [0], [1], [0, 0, 1, 1], [], []>} : vector<2x64xf32>, vector<64x160xf32>, vector<2x160xf32> -> vector<2x160xf32>
    %151 = arith.addf %149, %150 : vector<2x160xf32>
    %152 = vector.extract_strided_slice %151 {offsets = [0, 0], sizes = [2, 96], strides = [1, 1]} : vector<2x160xf32> to vector<2x96xf32>
    %153 = arith.negf %152 : vector<2x96xf32>
    %154 = math.exp %153 : vector<2x96xf32>
    %cst_31 = arith.constant 1.000000e+00 : f32
    %155 = vector.broadcast %cst_31 : f32 to vector<2x96xf32>
    %156 = arith.addf %155, %154 : vector<2x96xf32>
    %157 = arith.divf %155, %156 : vector<2x96xf32>
    %158 = vector.extract_strided_slice %151 {offsets = [0, 96], sizes = [2, 64], strides = [1, 1]} : vector<2x160xf32> to vector<2x64xf32>
    %159 = math.tanh %158 : vector<2x64xf32>
    %160 = vector.extract_strided_slice %157 {offsets = [0, 0], sizes = [2, 32], strides = [1, 1]} : vector<2x96xf32> to vector<2x32xf32>
    %161 = vector.extract_strided_slice %157 {offsets = [0, 32], sizes = [2, 32], strides = [1, 1]} : vector<2x96xf32> to vector<2x32xf32>
    %162 = vector.extract_strided_slice %157 {offsets = [0, 64], sizes = [2, 32], strides = [1, 1]} : vector<2x96xf32> to vector<2x32xf32>
    %163 = vector.extract_strided_slice %159 {offsets = [0, 0], sizes = [2, 32], strides = [1, 1]} : vector<2x64xf32> to vector<2x32xf32>
    %164 = vector.extract_strided_slice %159 {offsets = [0, 32], sizes = [2, 32], strides = [1, 1]} : vector<2x64xf32> to vector<2x32xf32>
    %165 = arith.mulf %161, %121 : vector<2x32xf32>
    %166 = arith.mulf %160, %163 : vector<2x32xf32>
    %167 = arith.addf %165, %166 : vector<2x32xf32>
    %168 = math.tanh %167 : vector<2x32xf32>
    %169 = arith.mulf %162, %168 : vector<2x32xf32>
    %170 = tpu.concatenate %169, %164 in 1 : vector<2x32xf32>, vector<2x32xf32> -> vector<2x64xf32>
    %171 = tpu.concatenate %170, %146 in 1 : vector<2x64xf32>, vector<2x64xf32> -> vector<2x128xf32>
    %cst_32 = arith.constant dense<0.000000e+00> : vector<2x160xf32>
    %172 = tpu.matmul %171, %1, %cst_32 {dimension_numbers = #tpu.dot_dimension_numbers<[1], [0], [0], [1], [0, 0, 1, 1], [], []>} : vector<2x128xf32>, vector<128x160xf32>, vector<2x160xf32> -> vector<2x160xf32>
    %173 = arith.addf %172, %4 : vector<2x160xf32>
    %174 = vector.extract_strided_slice %173 {offsets = [0, 0], sizes = [2, 96], strides = [1, 1]} : vector<2x160xf32> to vector<2x96xf32>
    %175 = arith.negf %174 : vector<2x96xf32>
    %176 = math.exp %175 : vector<2x96xf32>
    %cst_33 = arith.constant 1.000000e+00 : f32
    %177 = vector.broadcast %cst_33 : f32 to vector<2x96xf32>
    %178 = arith.addf %177, %176 : vector<2x96xf32>
    %179 = arith.divf %177, %178 : vector<2x96xf32>
    %180 = vector.extract_strided_slice %173 {offsets = [0, 96], sizes = [2, 64], strides = [1, 1]} : vector<2x160xf32> to vector<2x64xf32>
    %181 = math.tanh %180 : vector<2x64xf32>
    %182 = vector.extract_strided_slice %179 {offsets = [0, 0], sizes = [2, 32], strides = [1, 1]} : vector<2x96xf32> to vector<2x32xf32>
    %183 = vector.extract_strided_slice %179 {offsets = [0, 32], sizes = [2, 32], strides = [1, 1]} : vector<2x96xf32> to vector<2x32xf32>
    %184 = vector.extract_strided_slice %179 {offsets = [0, 64], sizes = [2, 32], strides = [1, 1]} : vector<2x96xf32> to vector<2x32xf32>
    %185 = vector.extract_strided_slice %181 {offsets = [0, 0], sizes = [2, 32], strides = [1, 1]} : vector<2x64xf32> to vector<2x32xf32>
    %186 = vector.extract_strided_slice %181 {offsets = [0, 32], sizes = [2, 32], strides = [1, 1]} : vector<2x64xf32> to vector<2x32xf32>
    %187 = arith.mulf %183, %143 : vector<2x32xf32>
    %188 = arith.mulf %182, %185 : vector<2x32xf32>
    %189 = arith.addf %187, %188 : vector<2x32xf32>
    %190 = math.tanh %189 : vector<2x32xf32>
    %191 = arith.mulf %184, %190 : vector<2x32xf32>
    %192 = tpu.concatenate %191, %186 in 1 : vector<2x32xf32>, vector<2x32xf32> -> vector<2x64xf32>
    %c4_i32 = arith.constant 4 : i32
    %193 = arith.index_cast %c4_i32 : i32 to index
    %c0_34 = arith.constant 0 : index
    %c0_35 = arith.constant 0 : index
    %194 = vector.load %arg0[%193, %c0_34, %c0_35] : memref<8x2x160xf32, #tpu.memory_space<vmem>>, vector<1x2x160xf32>
    %195 = vector.shape_cast %194 : vector<1x2x160xf32> to vector<2x160xf32>
    %cst_36 = arith.constant dense<0.000000e+00> : vector<2x160xf32>
    %196 = tpu.matmul %170, %0, %cst_36 {dimension_numbers = #tpu.dot_dimension_numbers<[1], [0], [0], [1], [0, 0, 1, 1], [], []>} : vector<2x64xf32>, vector<64x160xf32>, vector<2x160xf32> -> vector<2x160xf32>
    %197 = arith.addf %195, %196 : vector<2x160xf32>
    %198 = vector.extract_strided_slice %197 {offsets = [0, 0], sizes = [2, 96], strides = [1, 1]} : vector<2x160xf32> to vector<2x96xf32>
    %199 = arith.negf %198 : vector<2x96xf32>
    %200 = math.exp %199 : vector<2x96xf32>
    %cst_37 = arith.constant 1.000000e+00 : f32
    %201 = vector.broadcast %cst_37 : f32 to vector<2x96xf32>
    %202 = arith.addf %201, %200 : vector<2x96xf32>
    %203 = arith.divf %201, %202 : vector<2x96xf32>
    %204 = vector.extract_strided_slice %197 {offsets = [0, 96], sizes = [2, 64], strides = [1, 1]} : vector<2x160xf32> to vector<2x64xf32>
    %205 = math.tanh %204 : vector<2x64xf32>
    %206 = vector.extract_strided_slice %203 {offsets = [0, 0], sizes = [2, 32], strides = [1, 1]} : vector<2x96xf32> to vector<2x32xf32>
    %207 = vector.extract_strided_slice %203 {offsets = [0, 32], sizes = [2, 32], strides = [1, 1]} : vector<2x96xf32> to vector<2x32xf32>
    %208 = vector.extract_strided_slice %203 {offsets = [0, 64], sizes = [2, 32], strides = [1, 1]} : vector<2x96xf32> to vector<2x32xf32>
    %209 = vector.extract_strided_slice %205 {offsets = [0, 0], sizes = [2, 32], strides = [1, 1]} : vector<2x64xf32> to vector<2x32xf32>
    %210 = vector.extract_strided_slice %205 {offsets = [0, 32], sizes = [2, 32], strides = [1, 1]} : vector<2x64xf32> to vector<2x32xf32>
    %211 = arith.mulf %207, %167 : vector<2x32xf32>
    %212 = arith.mulf %206, %209 : vector<2x32xf32>
    %213 = arith.addf %211, %212 : vector<2x32xf32>
    %214 = math.tanh %213 : vector<2x32xf32>
    %215 = arith.mulf %208, %214 : vector<2x32xf32>
    %216 = tpu.concatenate %215, %210 in 1 : vector<2x32xf32>, vector<2x32xf32> -> vector<2x64xf32>
    %217 = tpu.concatenate %216, %192 in 1 : vector<2x64xf32>, vector<2x64xf32> -> vector<2x128xf32>
    %cst_38 = arith.constant dense<0.000000e+00> : vector<2x160xf32>
    %218 = tpu.matmul %217, %1, %cst_38 {dimension_numbers = #tpu.dot_dimension_numbers<[1], [0], [0], [1], [0, 0, 1, 1], [], []>} : vector<2x128xf32>, vector<128x160xf32>, vector<2x160xf32> -> vector<2x160xf32>
    %219 = arith.addf %218, %4 : vector<2x160xf32>
    %220 = vector.extract_strided_slice %219 {offsets = [0, 0], sizes = [2, 96], strides = [1, 1]} : vector<2x160xf32> to vector<2x96xf32>
    %221 = arith.negf %220 : vector<2x96xf32>
    %222 = math.exp %221 : vector<2x96xf32>
    %cst_39 = arith.constant 1.000000e+00 : f32
    %223 = vector.broadcast %cst_39 : f32 to vector<2x96xf32>
    %224 = arith.addf %223, %222 : vector<2x96xf32>
    %225 = arith.divf %223, %224 : vector<2x96xf32>
    %226 = vector.extract_strided_slice %219 {offsets = [0, 96], sizes = [2, 64], strides = [1, 1]} : vector<2x160xf32> to vector<2x64xf32>
    %227 = math.tanh %226 : vector<2x64xf32>
    %228 = vector.extract_strided_slice %225 {offsets = [0, 0], sizes = [2, 32], strides = [1, 1]} : vector<2x96xf32> to vector<2x32xf32>
    %229 = vector.extract_strided_slice %225 {offsets = [0, 32], sizes = [2, 32], strides = [1, 1]} : vector<2x96xf32> to vector<2x32xf32>
    %230 = vector.extract_strided_slice %225 {offsets = [0, 64], sizes = [2, 32], strides = [1, 1]} : vector<2x96xf32> to vector<2x32xf32>
    %231 = vector.extract_strided_slice %227 {offsets = [0, 0], sizes = [2, 32], strides = [1, 1]} : vector<2x64xf32> to vector<2x32xf32>
    %232 = vector.extract_strided_slice %227 {offsets = [0, 32], sizes = [2, 32], strides = [1, 1]} : vector<2x64xf32> to vector<2x32xf32>
    %233 = arith.mulf %229, %189 : vector<2x32xf32>
    %234 = arith.mulf %228, %231 : vector<2x32xf32>
    %235 = arith.addf %233, %234 : vector<2x32xf32>
    %236 = math.tanh %235 : vector<2x32xf32>
    %237 = arith.mulf %230, %236 : vector<2x32xf32>
    %238 = tpu.concatenate %237, %232 in 1 : vector<2x32xf32>, vector<2x32xf32> -> vector<2x64xf32>
    %c5_i32 = arith.constant 5 : i32
    %239 = arith.index_cast %c5_i32 : i32 to index
    %c0_40 = arith.constant 0 : index
    %c0_41 = arith.constant 0 : index
    %240 = vector.load %arg0[%239, %c0_40, %c0_41] : memref<8x2x160xf32, #tpu.memory_space<vmem>>, vector<1x2x160xf32>
    %241 = vector.shape_cast %240 : vector<1x2x160xf32> to vector<2x160xf32>
    %cst_42 = arith.constant dense<0.000000e+00> : vector<2x160xf32>
    %242 = tpu.matmul %216, %0, %cst_42 {dimension_numbers = #tpu.dot_dimension_numbers<[1], [0], [0], [1], [0, 0, 1, 1], [], []>} : vector<2x64xf32>, vector<64x160xf32>, vector<2x160xf32> -> vector<2x160xf32>
    %243 = arith.addf %241, %242 : vector<2x160xf32>
    %244 = vector.extract_strided_slice %243 {offsets = [0, 0], sizes = [2, 96], strides = [1, 1]} : vector<2x160xf32> to vector<2x96xf32>
    %245 = arith.negf %244 : vector<2x96xf32>
    %246 = math.exp %245 : vector<2x96xf32>
    %cst_43 = arith.constant 1.000000e+00 : f32
    %247 = vector.broadcast %cst_43 : f32 to vector<2x96xf32>
    %248 = arith.addf %247, %246 : vector<2x96xf32>
    %249 = arith.divf %247, %248 : vector<2x96xf32>
    %250 = vector.extract_strided_slice %243 {offsets = [0, 96], sizes = [2, 64], strides = [1, 1]} : vector<2x160xf32> to vector<2x64xf32>
    %251 = math.tanh %250 : vector<2x64xf32>
    %252 = vector.extract_strided_slice %249 {offsets = [0, 0], sizes = [2, 32], strides = [1, 1]} : vector<2x96xf32> to vector<2x32xf32>
    %253 = vector.extract_strided_slice %249 {offsets = [0, 32], sizes = [2, 32], strides = [1, 1]} : vector<2x96xf32> to vector<2x32xf32>
    %254 = vector.extract_strided_slice %249 {offsets = [0, 64], sizes = [2, 32], strides = [1, 1]} : vector<2x96xf32> to vector<2x32xf32>
    %255 = vector.extract_strided_slice %251 {offsets = [0, 0], sizes = [2, 32], strides = [1, 1]} : vector<2x64xf32> to vector<2x32xf32>
    %256 = vector.extract_strided_slice %251 {offsets = [0, 32], sizes = [2, 32], strides = [1, 1]} : vector<2x64xf32> to vector<2x32xf32>
    %257 = arith.mulf %253, %213 : vector<2x32xf32>
    %258 = arith.mulf %252, %255 : vector<2x32xf32>
    %259 = arith.addf %257, %258 : vector<2x32xf32>
    %260 = math.tanh %259 : vector<2x32xf32>
    %261 = arith.mulf %254, %260 : vector<2x32xf32>
    %262 = tpu.concatenate %261, %256 in 1 : vector<2x32xf32>, vector<2x32xf32> -> vector<2x64xf32>
    %263 = tpu.concatenate %262, %238 in 1 : vector<2x64xf32>, vector<2x64xf32> -> vector<2x128xf32>
    %cst_44 = arith.constant dense<0.000000e+00> : vector<2x160xf32>
    %264 = tpu.matmul %263, %1, %cst_44 {dimension_numbers = #tpu.dot_dimension_numbers<[1], [0], [0], [1], [0, 0, 1, 1], [], []>} : vector<2x128xf32>, vector<128x160xf32>, vector<2x160xf32> -> vector<2x160xf32>
    %265 = arith.addf %264, %4 : vector<2x160xf32>
    %266 = vector.extract_strided_slice %265 {offsets = [0, 0], sizes = [2, 96], strides = [1, 1]} : vector<2x160xf32> to vector<2x96xf32>
    %267 = arith.negf %266 : vector<2x96xf32>
    %268 = math.exp %267 : vector<2x96xf32>
    %cst_45 = arith.constant 1.000000e+00 : f32
    %269 = vector.broadcast %cst_45 : f32 to vector<2x96xf32>
    %270 = arith.addf %269, %268 : vector<2x96xf32>
    %271 = arith.divf %269, %270 : vector<2x96xf32>
    %272 = vector.extract_strided_slice %265 {offsets = [0, 96], sizes = [2, 64], strides = [1, 1]} : vector<2x160xf32> to vector<2x64xf32>
    %273 = math.tanh %272 : vector<2x64xf32>
    %274 = vector.extract_strided_slice %271 {offsets = [0, 0], sizes = [2, 32], strides = [1, 1]} : vector<2x96xf32> to vector<2x32xf32>
    %275 = vector.extract_strided_slice %271 {offsets = [0, 32], sizes = [2, 32], strides = [1, 1]} : vector<2x96xf32> to vector<2x32xf32>
    %276 = vector.extract_strided_slice %271 {offsets = [0, 64], sizes = [2, 32], strides = [1, 1]} : vector<2x96xf32> to vector<2x32xf32>
    %277 = vector.extract_strided_slice %273 {offsets = [0, 0], sizes = [2, 32], strides = [1, 1]} : vector<2x64xf32> to vector<2x32xf32>
    %278 = vector.extract_strided_slice %273 {offsets = [0, 32], sizes = [2, 32], strides = [1, 1]} : vector<2x64xf32> to vector<2x32xf32>
    %279 = arith.mulf %275, %235 : vector<2x32xf32>
    %280 = arith.mulf %274, %277 : vector<2x32xf32>
    %281 = arith.addf %279, %280 : vector<2x32xf32>
    %282 = math.tanh %281 : vector<2x32xf32>
    %283 = arith.mulf %276, %282 : vector<2x32xf32>
    %284 = tpu.concatenate %283, %278 in 1 : vector<2x32xf32>, vector<2x32xf32> -> vector<2x64xf32>
    %c6_i32 = arith.constant 6 : i32
    %285 = arith.index_cast %c6_i32 : i32 to index
    %c0_46 = arith.constant 0 : index
    %c0_47 = arith.constant 0 : index
    %286 = vector.load %arg0[%285, %c0_46, %c0_47] : memref<8x2x160xf32, #tpu.memory_space<vmem>>, vector<1x2x160xf32>
    %287 = vector.shape_cast %286 : vector<1x2x160xf32> to vector<2x160xf32>
    %cst_48 = arith.constant dense<0.000000e+00> : vector<2x160xf32>
    %288 = tpu.matmul %262, %0, %cst_48 {dimension_numbers = #tpu.dot_dimension_numbers<[1], [0], [0], [1], [0, 0, 1, 1], [], []>} : vector<2x64xf32>, vector<64x160xf32>, vector<2x160xf32> -> vector<2x160xf32>
    %289 = arith.addf %287, %288 : vector<2x160xf32>
    %290 = vector.extract_strided_slice %289 {offsets = [0, 0], sizes = [2, 96], strides = [1, 1]} : vector<2x160xf32> to vector<2x96xf32>
    %291 = arith.negf %290 : vector<2x96xf32>
    %292 = math.exp %291 : vector<2x96xf32>
    %cst_49 = arith.constant 1.000000e+00 : f32
    %293 = vector.broadcast %cst_49 : f32 to vector<2x96xf32>
    %294 = arith.addf %293, %292 : vector<2x96xf32>
    %295 = arith.divf %293, %294 : vector<2x96xf32>
    %296 = vector.extract_strided_slice %289 {offsets = [0, 96], sizes = [2, 64], strides = [1, 1]} : vector<2x160xf32> to vector<2x64xf32>
    %297 = math.tanh %296 : vector<2x64xf32>
    %298 = vector.extract_strided_slice %295 {offsets = [0, 0], sizes = [2, 32], strides = [1, 1]} : vector<2x96xf32> to vector<2x32xf32>
    %299 = vector.extract_strided_slice %295 {offsets = [0, 32], sizes = [2, 32], strides = [1, 1]} : vector<2x96xf32> to vector<2x32xf32>
    %300 = vector.extract_strided_slice %295 {offsets = [0, 64], sizes = [2, 32], strides = [1, 1]} : vector<2x96xf32> to vector<2x32xf32>
    %301 = vector.extract_strided_slice %297 {offsets = [0, 0], sizes = [2, 32], strides = [1, 1]} : vector<2x64xf32> to vector<2x32xf32>
    %302 = vector.extract_strided_slice %297 {offsets = [0, 32], sizes = [2, 32], strides = [1, 1]} : vector<2x64xf32> to vector<2x32xf32>
    %303 = arith.mulf %299, %259 : vector<2x32xf32>
    %304 = arith.mulf %298, %301 : vector<2x32xf32>
    %305 = arith.addf %303, %304 : vector<2x32xf32>
    %306 = math.tanh %305 : vector<2x32xf32>
    %307 = arith.mulf %300, %306 : vector<2x32xf32>
    %308 = tpu.concatenate %307, %302 in 1 : vector<2x32xf32>, vector<2x32xf32> -> vector<2x64xf32>
    %309 = tpu.concatenate %308, %284 in 1 : vector<2x64xf32>, vector<2x64xf32> -> vector<2x128xf32>
    %cst_50 = arith.constant dense<0.000000e+00> : vector<2x160xf32>
    %310 = tpu.matmul %309, %1, %cst_50 {dimension_numbers = #tpu.dot_dimension_numbers<[1], [0], [0], [1], [0, 0, 1, 1], [], []>} : vector<2x128xf32>, vector<128x160xf32>, vector<2x160xf32> -> vector<2x160xf32>
    %311 = arith.addf %310, %4 : vector<2x160xf32>
    %312 = vector.extract_strided_slice %311 {offsets = [0, 0], sizes = [2, 96], strides = [1, 1]} : vector<2x160xf32> to vector<2x96xf32>
    %313 = arith.negf %312 : vector<2x96xf32>
    %314 = math.exp %313 : vector<2x96xf32>
    %cst_51 = arith.constant 1.000000e+00 : f32
    %315 = vector.broadcast %cst_51 : f32 to vector<2x96xf32>
    %316 = arith.addf %315, %314 : vector<2x96xf32>
    %317 = arith.divf %315, %316 : vector<2x96xf32>
    %318 = vector.extract_strided_slice %311 {offsets = [0, 96], sizes = [2, 64], strides = [1, 1]} : vector<2x160xf32> to vector<2x64xf32>
    %319 = math.tanh %318 : vector<2x64xf32>
    %320 = vector.extract_strided_slice %317 {offsets = [0, 0], sizes = [2, 32], strides = [1, 1]} : vector<2x96xf32> to vector<2x32xf32>
    %321 = vector.extract_strided_slice %317 {offsets = [0, 32], sizes = [2, 32], strides = [1, 1]} : vector<2x96xf32> to vector<2x32xf32>
    %322 = vector.extract_strided_slice %317 {offsets = [0, 64], sizes = [2, 32], strides = [1, 1]} : vector<2x96xf32> to vector<2x32xf32>
    %323 = vector.extract_strided_slice %319 {offsets = [0, 0], sizes = [2, 32], strides = [1, 1]} : vector<2x64xf32> to vector<2x32xf32>
    %324 = vector.extract_strided_slice %319 {offsets = [0, 32], sizes = [2, 32], strides = [1, 1]} : vector<2x64xf32> to vector<2x32xf32>
    %325 = arith.mulf %321, %281 : vector<2x32xf32>
    %326 = arith.mulf %320, %323 : vector<2x32xf32>
    %327 = arith.addf %325, %326 : vector<2x32xf32>
    %328 = math.tanh %327 : vector<2x32xf32>
    %329 = arith.mulf %322, %328 : vector<2x32xf32>
    %330 = tpu.concatenate %329, %324 in 1 : vector<2x32xf32>, vector<2x32xf32> -> vector<2x64xf32>
    %c7_i32 = arith.constant 7 : i32
    %331 = arith.index_cast %c7_i32 : i32 to index
    %c0_52 = arith.constant 0 : index
    %c0_53 = arith.constant 0 : index
    %332 = vector.load %arg0[%331, %c0_52, %c0_53] : memref<8x2x160xf32, #tpu.memory_space<vmem>>, vector<1x2x160xf32>
    %333 = vector.shape_cast %332 : vector<1x2x160xf32> to vector<2x160xf32>
    %cst_54 = arith.constant dense<0.000000e+00> : vector<2x160xf32>
    %334 = tpu.matmul %308, %0, %cst_54 {dimension_numbers = #tpu.dot_dimension_numbers<[1], [0], [0], [1], [0, 0, 1, 1], [], []>} : vector<2x64xf32>, vector<64x160xf32>, vector<2x160xf32> -> vector<2x160xf32>
    %335 = arith.addf %333, %334 : vector<2x160xf32>
    %336 = vector.extract_strided_slice %335 {offsets = [0, 0], sizes = [2, 96], strides = [1, 1]} : vector<2x160xf32> to vector<2x96xf32>
    %337 = arith.negf %336 : vector<2x96xf32>
    %338 = math.exp %337 : vector<2x96xf32>
    %cst_55 = arith.constant 1.000000e+00 : f32
    %339 = vector.broadcast %cst_55 : f32 to vector<2x96xf32>
    %340 = arith.addf %339, %338 : vector<2x96xf32>
    %341 = arith.divf %339, %340 : vector<2x96xf32>
    %342 = vector.extract_strided_slice %335 {offsets = [0, 96], sizes = [2, 64], strides = [1, 1]} : vector<2x160xf32> to vector<2x64xf32>
    %343 = math.tanh %342 : vector<2x64xf32>
    %344 = vector.extract_strided_slice %341 {offsets = [0, 0], sizes = [2, 32], strides = [1, 1]} : vector<2x96xf32> to vector<2x32xf32>
    %345 = vector.extract_strided_slice %341 {offsets = [0, 32], sizes = [2, 32], strides = [1, 1]} : vector<2x96xf32> to vector<2x32xf32>
    %346 = vector.extract_strided_slice %341 {offsets = [0, 64], sizes = [2, 32], strides = [1, 1]} : vector<2x96xf32> to vector<2x32xf32>
    %347 = vector.extract_strided_slice %343 {offsets = [0, 0], sizes = [2, 32], strides = [1, 1]} : vector<2x64xf32> to vector<2x32xf32>
    %348 = vector.extract_strided_slice %343 {offsets = [0, 32], sizes = [2, 32], strides = [1, 1]} : vector<2x64xf32> to vector<2x32xf32>
    %349 = arith.mulf %345, %305 : vector<2x32xf32>
    %350 = arith.mulf %344, %347 : vector<2x32xf32>
    %351 = arith.addf %349, %350 : vector<2x32xf32>
    %352 = math.tanh %351 : vector<2x32xf32>
    %353 = arith.mulf %346, %352 : vector<2x32xf32>
    %354 = tpu.concatenate %353, %348 in 1 : vector<2x32xf32>, vector<2x32xf32> -> vector<2x64xf32>
    %355 = tpu.concatenate %354, %330 in 1 : vector<2x64xf32>, vector<2x64xf32> -> vector<2x128xf32>
    %cst_56 = arith.constant dense<0.000000e+00> : vector<2x160xf32>
    %356 = tpu.matmul %355, %1, %cst_56 {dimension_numbers = #tpu.dot_dimension_numbers<[1], [0], [0], [1], [0, 0, 1, 1], [], []>} : vector<2x128xf32>, vector<128x160xf32>, vector<2x160xf32> -> vector<2x160xf32>
    %357 = arith.addf %356, %4 : vector<2x160xf32>
    %358 = vector.extract_strided_slice %357 {offsets = [0, 0], sizes = [2, 96], strides = [1, 1]} : vector<2x160xf32> to vector<2x96xf32>
    %359 = arith.negf %358 : vector<2x96xf32>
    %360 = math.exp %359 : vector<2x96xf32>
    %cst_57 = arith.constant 1.000000e+00 : f32
    %361 = vector.broadcast %cst_57 : f32 to vector<2x96xf32>
    %362 = arith.addf %361, %360 : vector<2x96xf32>
    %363 = arith.divf %361, %362 : vector<2x96xf32>
    %364 = vector.extract_strided_slice %357 {offsets = [0, 96], sizes = [2, 64], strides = [1, 1]} : vector<2x160xf32> to vector<2x64xf32>
    %365 = math.tanh %364 : vector<2x64xf32>
    %366 = vector.extract_strided_slice %363 {offsets = [0, 0], sizes = [2, 32], strides = [1, 1]} : vector<2x96xf32> to vector<2x32xf32>
    %367 = vector.extract_strided_slice %363 {offsets = [0, 32], sizes = [2, 32], strides = [1, 1]} : vector<2x96xf32> to vector<2x32xf32>
    %368 = vector.extract_strided_slice %363 {offsets = [0, 64], sizes = [2, 32], strides = [1, 1]} : vector<2x96xf32> to vector<2x32xf32>
    %369 = vector.extract_strided_slice %365 {offsets = [0, 0], sizes = [2, 32], strides = [1, 1]} : vector<2x64xf32> to vector<2x32xf32>
    %370 = vector.extract_strided_slice %365 {offsets = [0, 32], sizes = [2, 32], strides = [1, 1]} : vector<2x64xf32> to vector<2x32xf32>
    %371 = arith.mulf %367, %327 : vector<2x32xf32>
    %372 = arith.mulf %366, %369 : vector<2x32xf32>
    %373 = arith.addf %371, %372 : vector<2x32xf32>
    %374 = math.tanh %373 : vector<2x32xf32>
    %375 = arith.mulf %368, %374 : vector<2x32xf32>
    %376 = tpu.concatenate %375, %370 in 1 : vector<2x32xf32>, vector<2x32xf32> -> vector<2x64xf32>
    %c8_i32 = arith.constant 8 : i32
    %cst_58 = arith.constant dense<0.000000e+00> : vector<2x1xf32>
    %377 = tpu.matmul %376, %5, %cst_58 {dimension_numbers = #tpu.dot_dimension_numbers<[1], [0], [0], [1], [0, 0, 1, 1], [], []>} : vector<2x64xf32>, vector<64x1xf32>, vector<2x1xf32> -> vector<2x1xf32>
    %378 = vector.broadcast %6 : vector<1x1xf32> to vector<2x1xf32>
    %379 = arith.addf %377, %378 : vector<2x1xf32>
    %cst_59 = arith.constant 0.000000e+00 : f32
    %380 = vector.broadcast %cst_59 : f32 to vector<2x1xf32>
    %381 = arith.maximumf %379, %380 : vector<2x1xf32>
    %c0_60 = arith.constant 0 : index
    %c0_61 = arith.constant 0 : index
    %382 = vector.load %arg6[%c0_60, %c0_61] : memref<2x1xf32, #tpu.memory_space<vmem>>, vector<2x1xf32>
    tpu.vector_store %arg6[%c0_60, %c0_61], %381 {strides = array<i32>} : memref<2x1xf32, #tpu.memory_space<vmem>>, vector<2x1xf32>,
    return
  }
}

</mosaic_0001>

<llo_original>
// kernel: ensemble_forward.1
$region0: #{ensemble_forward.1}
  #allocation0 [shape = 'u32[]', space=smem, size = 0x4, offset = 0x4, fixed_abs, tag = 'smem constant byte address 0x4 - core index']
  #allocation1 [shape = 'u32[144,128]{1,0:T(1,128)}', space=vmem, size = 0x12000, scoped, tag = 'internal scratch']
  #allocation2 [shape = 'f32[1,1]{1,0:T(1,128)S(1)}', space=vmem, size = 0x200, scoped, tag = 'scoped memory for ensemble_forward.1']
  %s0 = inlined_call_operand.vmem [shape: f32[8,2,160], index: 0, kind: input, shape index: {}]
  %s1 = inlined_call_operand.vmem [shape: f32[64,160], index: 1, kind: input, shape index: {}]
  %s2 = inlined_call_operand.vmem [shape: f32[128,160], index: 2, kind: input, shape index: {}]
  %s3 = inlined_call_operand.vmem [shape: f32[1,160], index: 3, kind: input, shape index: {}]
  %s4 = inlined_call_operand.vmem [shape: f32[64,1], index: 4, kind: input, shape index: {}]
  %s5 = inlined_call_operand.<no memory space> [shape: f32[1,1], index: 5, kind: input, shape index: {}]
  %s6 = inlined_call_operand.vmem [shape: f32[2,1], index: 6, kind: output, shape index: {}]
  %s7 = sld [smem:[#allocation0]]
  $region34: #{ensemble_forward.1} parent=0
    _
  %s9 = ssub.s32 1, %s7
  %s10 = scalar_select 0, %s9, %s7
  %v11 = vstv %s5
  %12 = vst [vmem:[#allocation2] sm:$0x1] %v11
  // Predicated region
  $region2: #{ensemble_forward.1} parent=0 // pred_check
    _
  $region3: #{ensemble_forward.1} parent=0 // pred_check_branch
    %14 = sbr.rel (0) target = $region5
  $region4: #{ensemble_forward.1} parent=0 // pred_region
    _
  $region5: #{ensemble_forward.1} parent=0 // pred_fallthru
    _
  // Predicated region
  $region6: #{ensemble_forward.1} parent=0 // pred_check
    _
  $region7: #{ensemble_forward.1} parent=0 // pred_check_branch
    %16 = sbr.rel (0) target = $region9
  $region8: #{ensemble_forward.1} parent=0 // pred_region
    _
  $region9: #{ensemble_forward.1} parent=0 // pred_fallthru
    _
  // Predicated region
  $region10: #{ensemble_forward.1} parent=0 // pred_check
    _
  $region11: #{ensemble_forward.1} parent=0 // pred_check_branch
    %18 = sbr.rel (0) target = $region13
  $region12: #{ensemble_forward.1} parent=0 // pred_region
    _
  $region13: #{ensemble_forward.1} parent=0 // pred_fallthru
    _
  // Predicated region
  $region14: #{ensemble_forward.1} parent=0 // pred_check
    _
  $region15: #{ensemble_forward.1} parent=0 // pred_check_branch
    %20 = sbr.rel (0) target = $region17
  $region16: #{ensemble_forward.1} parent=0 // pred_region
    _
  $region17: #{ensemble_forward.1} parent=0 // pred_fallthru
    _
  // Predicated region
  $region18: #{ensemble_forward.1} parent=0 // pred_check
    _
  $region19: #{ensemble_forward.1} parent=0 // pred_check_branch
    %22 = sbr.rel (0) target = $region21
  $region20: #{ensemble_forward.1} parent=0 // pred_region
    _
  $region21: #{ensemble_forward.1} parent=0 // pred_fallthru
    _
  // Predicated region
  $region22: #{ensemble_forward.1} parent=0 // pred_check
    _
  $region23: #{ensemble_forward.1} parent=0 // pred_check_branch
    %24 = sbr.rel (0) target = $region25
  $region24: #{ensemble_forward.1} parent=0 // pred_region
    _
  $region25: #{ensemble_forward.1} parent=0 // pred_fallthru
    _
  %v25 = vld [vmem:[%s1] sm:$0xff]
  %v26 = vld [vmem:[%s1 + $0x8] sm:$0xff]
  %v27 = vld [vmem:[%s1 + $0x10] sm:$0xff]
  %v28 = vld [vmem:[%s1 + $0x18] sm:$0xff]
  %v29 = vld [vmem:[%s1 + $0x20] sm:$0xff]
  %v30 = vld [vmem:[%s1 + $0x28] sm:$0xff]
  %v31 = vld [vmem:[%s1 + $0x30] sm:$0xff]
  %v32 = vld [vmem:[%s1 + $0x38] sm:$0xff]
  %v33 = vld [vmem:[%s1 + $0x40] sm:$0xff]
  %v34 = vld [vmem:[%s1 + $0x48] sm:$0xff]
  %v35 = vld [vmem:[%s1 + $0x50] sm:$0xff]
  %v36 = vld [vmem:[%s1 + $0x58] sm:$0xff]
  %v37 = vld [vmem:[%s1 + $0x60] sm:$0xff]
  %v38 = vld [vmem:[%s1 + $0x68] sm:$0xff]
  %v39 = vld [vmem:[%s1 + $0x70] sm:$0xff]
  %v40 = vld [vmem:[%s1 + $0x78] sm:$0xff]
  %v41 = vld [vmem:[%s2] sm:$0xff]
  %v42 = vld [vmem:[%s2 + $0x8] sm:$0xff]
  %v43 = vld [vmem:[%s2 + $0x10] sm:$0xff]
  %v44 = vld [vmem:[%s2 + $0x18] sm:$0xff]
  %v45 = vld [vmem:[%s2 + $0x20] sm:$0xff]
  %v46 = vld [vmem:[%s2 + $0x28] sm:$0xff]
  %v47 = vld [vmem:[%s2 + $0x30] sm:$0xff]
  %v48 = vld [vmem:[%s2 + $0x38] sm:$0xff]
  %v49 = vld [vmem:[%s2 + $0x40] sm:$0xff]
  %v50 = vld [vmem:[%s2 + $0x48] sm:$0xff]
  %v51 = vld [vmem:[%s2 + $0x50] sm:$0xff]
  %v52 = vld [vmem:[%s2 + $0x58] sm:$0xff]
  %v53 = vld [vmem:[%s2 + $0x60] sm:$0xff]
  %v54 = vld [vmem:[%s2 + $0x68] sm:$0xff]
  %v55 = vld [vmem:[%s2 + $0x70] sm:$0xff]
  %v56 = vld [vmem:[%s2 + $0x78] sm:$0xff]
  %v57 = vld [vmem:[%s2 + $0x80] sm:$0xff]
  %v58 = vld [vmem:[%s2 + $0x88] sm:$0xff]
  %v59 = vld [vmem:[%s2 + $0x90] sm:$0xff]
  %v60 = vld [vmem:[%s2 + $0x98] sm:$0xff]
  %v61 = vld [vmem:[%s2 + $0xa0] sm:$0xff]
  %v62 = vld [vmem:[%s2 + $0xa8] sm:$0xff]
  %v63 = vld [vmem:[%s2 + $0xb0] sm:$0xff]
  %v64 = vld [vmem:[%s2 + $0xb8] sm:$0xff]
  %v65 = vld [vmem:[%s2 + $0xc0] sm:$0xff]
  %v66 = vld [vmem:[%s2 + $0xc8] sm:$0xff]
  %v67 = vld [vmem:[%s2 + $0xd0] sm:$0xff]
  %v68 = vld [vmem:[%s2 + $0xd8] sm:$0xff]
  %v69 = vld [vmem:[%s2 + $0xe0] sm:$0xff]
  %v70 = vld [vmem:[%s2 + $0xe8] sm:$0xff]
  %v71 = vld [vmem:[%s2 + $0xf0] sm:$0xff]
  %v72 = vld [vmem:[%s2 + $0xf8] sm:$0xff]
  %v73 = vld [vmem:[%s3] sm:$0x3]
  %v75 = vlaneseq
  %v76 = vshrl.u32 %v75, 7
  %v77 = vsub.s32 0, %v76
  %v78 = vrot.slane %v73, %v77
  %v79 = vlaneseq
  %v80 = vshrl.u32 %v79, 7
  %v81 = vsub.s32 1, %v80
  %v82 = vrot.slane %v73, %v81
  %v85 = vld [vmem:[%s4] sm:$0xff]
  %v86 = vld [vmem:[%s4 + $0x8] sm:$0xff]
  %v87 = vld [vmem:[%s4 + $0x10] sm:$0xff]
  %v88 = vld [vmem:[%s4 + $0x18] sm:$0xff]
  %v89 = vld [vmem:[%s4 + $0x20] sm:$0xff]
  %v90 = vld [vmem:[%s4 + $0x28] sm:$0xff]
  %v91 = vld [vmem:[%s4 + $0x30] sm:$0xff]
  %v92 = vld [vmem:[%s4 + $0x38] sm:$0xff]
  %v93 = vld [vmem:[#allocation2] sm:$0x1]
  %v94 = vld [vmem:[%s0] sm:$0xf]
  %vm95 = vcmask 523264
  %v97 = vsel %vm95, 0.0, 0
  %99 = vmatprep.subr.mxu0 %v26
  %100 = vmatpush1.msra.mxu0 %v25
  %101 = vmatprep.subr.mxu0 %v28
  %102 = vmatpush1.msra.mxu0 %v27
  %103 = vmatprep.subr.mxu0 %v30
  %104 = vmatpush1.msra.mxu0 %v29
  %105 = vmatprep.subr.mxu0 %v32
  %106 = vmatpush1.msra.mxu0 %v31
  %107 = vmatprep.subr.mxu0 %v34
  %108 = vmatpush1.msra.mxu0 %v33
  %109 = vmatprep.subr.mxu0 %v36
  %110 = vmatpush1.msra.mxu0 %v35
  %111 = vmatprep.subr.mxu0 %v38
  %112 = vmatpush1.msra.mxu0 %v37
  %113 = vmatprep.subr.mxu0 %v40
  %114 = vmatpush1.msra.mxu0 %v39
  %115 = vmatprep.subr.mxu0 0.0
  %116 = vmatpush1.msra.mxu0 0.0
  %117 = vmatprep.subr.mxu0 0.0
  %118 = vmatpush1.msra.mxu0 0.0
  %119 = vmatprep.subr.mxu0 0.0
  %120 = vmatpush1.msra.mxu0 0.0
  %121 = vmatprep.subr.mxu0 0.0
  %122 = vmatpush1.msra.mxu0 0.0
  %123 = vmatprep.subr.mxu0 0.0
  %124 = vmatpush1.msra.mxu0 0.0
  %125 = vmatprep.subr.mxu0 0.0
  %126 = vmatpush1.msra.mxu0 0.0
  %127 = vmatprep.subr.mxu0 0.0
  %128 = vmatpush1.msra.mxu0 0.0
  %129 = vmatprep.subr.mxu0 0.0
  %130 = vmatpush1.msra.mxu0 0.0
  %131 = vmatprep.subr.mxu0 0.0
  %132 = vmatpush1.msra.mxu0 0.0
  %133 = vmatprep.subr.mxu0 0.0
  %134 = vmatpush1.msra.mxu0 0.0
  %135 = vmatprep.subr.mxu0 0.0
  %136 = vmatpush1.msra.mxu0 0.0
  %137 = vmatprep.subr.mxu0 0.0
  %138 = vmatpush1.msra.mxu0 0.0
  %139 = vmatprep.subr.mxu0 0.0
  %140 = vmatpush1.msra.mxu0 0.0
  %141 = vmatprep.subr.mxu0 0.0
  %142 = vmatpush1.msra.mxu0 0.0
  %143 = vmatprep.subr.mxu0 0.0
  %144 = vmatpush1.msra.mxu0 0.0
  %145 = vmatprep.subr.mxu0 0.0
  %146 = vmatpush1.msra.mxu0 0.0
  %147 = vmatprep.subr.mxu0 0.0
  %148 = vmatpush1.msra.mxu0 0.0
  %149 = vmatprep.subr.mxu0 0.0
  %150 = vmatpush1.msra.mxu0 0.0
  %151 = vmatprep.subr.mxu0 0.0
  %152 = vmatpush1.msra.mxu0 0.0
  %153 = vmatprep.subr.mxu0 0.0
  %154 = vmatpush1.msra.mxu0 0.0
  %155 = vmatprep.subr.mxu0 0.0
  %156 = vmatpush1.msra.mxu0 0.0
  %157 = vmatprep.subr.mxu0 0.0
  %158 = vmatpush1.msra.mxu0 0.0
  %159 = vmatprep.subr.mxu0 0.0
  %160 = vmatpush1.msra.mxu0 0.0
  %161 = vmatprep.subr.mxu0 0.0
  %162 = vmatpush1.msra.mxu0 0.0
  %163 = vmatprep.mubr.f32.mxu0 0.0
  %164 = vmatmul.mubr.f32.gmra.mrb[0].mxu0 %v97
  %v165 = vpop.f32.mrb[0].mxu0
  %v166 = vadd.f32 0.0, %v165
  %v167 = vpop.f32.mrb[0].mxu0
  %v168 = vadd.f32 0.0, %v167
  %169 = vdwg.mxu0
  %v172 = vcombine.low %v166, %v168
  %v174 = vunpack.c.l.s4 1983009808
  %v175 = vunpack.c.0.s8 %v174
  %v176 = vlaneseq
  %v177 = vshrl.u32 %v176, 7
  %v178 = vsub.s32 %v175, %v177
  %v179 = vrot.slane %v172, %v178
  %v181 = vadd.f32 %v94, %v179
  %v182 = vxor.u32 %v181, 2147483648
  %v183 = vmul.f32 %v182, 1.442695
  %v184 = vpow.pop %v183
  %v185 = vadd.f32 %v184, 1.0
  %v186 = vrcp.pop %v185
  %v187 = vmul.f32 1.0, %v186
  %v188 = vtanh.pop %v181
  %v189 = vmul.f32 %v187, 0.0
  %191 = vrot.lane.b32.xlu0 %v188, 32
  %v192 = vpop.permute.xlu0 %191
  %v194 = vmul.f32 %v187, %v192
  %196 = vrot.lane.b32.xlu0 %v194, 32
  %v197 = vpop.permute.xlu0 %196
  %v199 = vadd.f32 %v189, %v197
  %v200 = vtanh.pop %v199
  %202 = vrot.lane.b32.xlu0 %v200, 32
  %v203 = vpop.permute.xlu0 %202
  %v205 = vmul.f32 %v187, %v203
  %v208 = vunpack.c.l.s4 1983009808
  %v209 = vunpack.c.0.s8 %v208
  %v210 = vlaneseq
  %v211 = vshrl.u32 %v210, 7
  %v212 = vsub.s32 %v209, %v211
  %v213 = vrot.slane %v205, %v212
  %214 = vrot.lane.b32.xlu0 %v213, 64
  %v215 = vpop.permute.xlu0 %214
  %v218 = vunpack.c.l.s4 1983009808
  %v219 = vunpack.c.0.s8 %v218
  %v220 = vlaneseq
  %v221 = vshrl.u32 %v220, 7
  %v222 = vsub.s32 %v219, %v221
  %v223 = vrot.slane %v188, %v222
  %v224 = vcombine.high %v223, %v223
  %225 = vrot.lane.b32.xlu0 %v224, 32
  %v226 = vpop.permute.xlu0 %225
  %vm228 = vcmask 261120
  %v229 = vsel %vm228, %v215, %v226
  %v230 = vsel %vm95, %v229, 0.0
  %231 = vmatprep.subr.mxu0 %v42
  %232 = vmatpush1.msra.mxu0 %v41
  %233 = vmatprep.subr.mxu0 %v44
  %234 = vmatpush1.msra.mxu0 %v43
  %235 = vmatprep.subr.mxu0 %v46
  %236 = vmatpush1.msra.mxu0 %v45
  %237 = vmatprep.subr.mxu0 %v48
  %238 = vmatpush1.msra.mxu0 %v47
  %239 = vmatprep.subr.mxu0 %v50
  %240 = vmatpush1.msra.mxu0 %v49
  %241 = vmatprep.subr.mxu0 %v52
  %242 = vmatpush1.msra.mxu0 %v51
  %243 = vmatprep.subr.mxu0 %v54
  %244 = vmatpush1.msra.mxu0 %v53
  %245 = vmatprep.subr.mxu0 %v56
  %246 = vmatpush1.msra.mxu0 %v55
  %247 = vmatprep.subr.mxu0 %v58
  %248 = vmatpush1.msra.mxu0 %v57
  %249 = vmatprep.subr.mxu0 %v60
  %250 = vmatpush1.msra.mxu0 %v59
  %251 = vmatprep.subr.mxu0 %v62
  %252 = vmatpush1.msra.mxu0 %v61
  %253 = vmatprep.subr.mxu0 %v64
  %254 = vmatpush1.msra.mxu0 %v63
  %255 = vmatprep.subr.mxu0 %v66
  %256 = vmatpush1.msra.mxu0 %v65
  %257 = vmatprep.subr.mxu0 %v68
  %258 = vmatpush1.msra.mxu0 %v67
  %259 = vmatprep.subr.mxu0 %v70
  %260 = vmatpush1.msra.mxu0 %v69
  %261 = vmatprep.subr.mxu0 %v72
  %262 = vmatpush1.msra.mxu0 %v71
  %263 = vmatprep.subr.mxu0 0.0
  %264 = vmatpush1.msra.mxu0 0.0
  %265 = vmatprep.subr.mxu0 0.0
  %266 = vmatpush1.msra.mxu0 0.0
  %267 = vmatprep.subr.mxu0 0.0
  %268 = vmatpush1.msra.mxu0 0.0
  %269 = vmatprep.subr.mxu0 0.0
  %270 = vmatpush1.msra.mxu0 0.0
  %271 = vmatprep.subr.mxu0 0.0
  %272 = vmatpush1.msra.mxu0 0.0
  %273 = vmatprep.subr.mxu0 0.0
  %274 = vmatpush1.msra.mxu0 0.0
  %275 = vmatprep.subr.mxu0 0.0
  %276 = vmatpush1.msra.mxu0 0.0
  %277 = vmatprep.subr.mxu0 0.0
  %278 = vmatpush1.msra.mxu0 0.0
  %279 = vmatprep.subr.mxu0 0.0
  %280 = vmatpush1.msra.mxu0 0.0
  %281 = vmatprep.subr.mxu0 0.0
  %282 = vmatpush1.msra.mxu0 0.0
  %283 = vmatprep.subr.mxu0 0.0
  %284 = vmatpush1.msra.mxu0 0.0
  %285 = vmatprep.subr.mxu0 0.0
  %286 = vmatpush1.msra.mxu0 0.0
  %287 = vmatprep.subr.mxu0 0.0
  %288 = vmatpush1.msra.mxu0 0.0
  %289 = vmatprep.subr.mxu0 0.0
  %290 = vmatpush1.msra.mxu0 0.0
  %291 = vmatprep.subr.mxu0 0.0
  %292 = vmatpush1.msra.mxu0 0.0
  %293 = vmatprep.subr.mxu0 0.0
  %294 = vmatpush1.msra.mxu0 0.0
  %295 = vmatprep.mubr.f32.mxu0 0.0
  %296 = vmatmul.mubr.f32.gmra.mrb[0].mxu0 %v230
  %v297 = vpop.f32.mrb[0].mxu0
  %v298 = vadd.f32 %v78, %v297
  %v299 = vpop.f32.mrb[0].mxu0
  %v300 = vadd.f32 %v82, %v299
  %301 = vdwg.mxu0
  %v302 = vxor.u32 %v298, 2147483648
  %v303 = vmul.f32 %v302, 1.442695
  %v304 = vpow.pop %v303
  %v305 = vadd.f32 %v304, 1.0
  %v306 = vrcp.pop %v305
  %v307 = vmul.f32 1.0, %v306
  %v308 = vtanh.pop %v298
  %v309 = vtanh.pop %v300
  %v310 = vmul.f32 %v307, 0.0
  %312 = vrot.lane.b32.xlu0 %v308, 32
  %v313 = vpop.permute.xlu0 %312
  %v315 = vmul.f32 %v307, %v313
  %317 = vrot.lane.b32.xlu0 %v315, 32
  %v318 = vpop.permute.xlu0 %317
  %v320 = vadd.f32 %v310, %v318
  %v321 = vtanh.pop %v320
  %323 = vrot.lane.b32.xlu0 %v321, 32
  %v324 = vpop.permute.xlu0 %323
  %v326 = vmul.f32 %v307, %v324
  %328 = vrot.lane.b32.xlu0 %v326, 64
  %v329 = vpop.permute.xlu0 %328
  %332 = vrot.lane.b32.xlu0 %v309, 32
  %v333 = vpop.permute.xlu0 %332
  %v335 = vsel %vm228, %v329, %v333
  %s336 = scalar_lea.vmem %s0, 4
  %v337 = vld [vmem:[%s336] sm:$0xf]
  %v339 = vsel %vm95, %v229, 0
  %341 = vmatprep.subr.mxu0 %v26
  %342 = vmatpush1.msra.mxu0 %v25
  %343 = vmatprep.subr.mxu0 %v28
  %344 = vmatpush1.msra.mxu0 %v27
  %345 = vmatprep.subr.mxu0 %v30
  %346 = vmatpush1.msra.mxu0 %v29
  %347 = vmatprep.subr.mxu0 %v32
  %348 = vmatpush1.msra.mxu0 %v31
  %349 = vmatprep.subr.mxu0 %v34
  %350 = vmatpush1.msra.mxu0 %v33
  %351 = vmatprep.subr.mxu0 %v36
  %352 = vmatpush1.msra.mxu0 %v35
  %353 = vmatprep.subr.mxu0 %v38
  %354 = vmatpush1.msra.mxu0 %v37
  %355 = vmatprep.subr.mxu0 %v40
  %356 = vmatpush1.msra.mxu0 %v39
  %357 = vmatprep.subr.mxu0 0.0
  %358 = vmatpush1.msra.mxu0 0.0
  %359 = vmatprep.subr.mxu0 0.0
  %360 = vmatpush1.msra.mxu0 0.0
  %361 = vmatprep.subr.mxu0 0.0
  %362 = vmatpush1.msra.mxu0 0.0
  %363 = vmatprep.subr.mxu0 0.0
  %364 = vmatpush1.msra.mxu0 0.0
  %365 = vmatprep.subr.mxu0 0.0
  %366 = vmatpush1.msra.mxu0 0.0
  %367 = vmatprep.subr.mxu0 0.0
  %368 = vmatpush1.msra.mxu0 0.0
  %369 = vmatprep.subr.mxu0 0.0
  %370 = vmatpush1.msra.mxu0 0.0
  %371 = vmatprep.subr.mxu0 0.0
  %372 = vmatpush1.msra.mxu0 0.0
  %373 = vmatprep.subr.mxu0 0.0
  %374 = vmatpush1.msra.mxu0 0.0
  %375 = vmatprep.subr.mxu0 0.0
  %376 = vmatpush1.msra.mxu0 0.0
  %377 = vmatprep.subr.mxu0 0.0
  %378 = vmatpush1.msra.mxu0 0.0
  %379 = vmatprep.subr.mxu0 0.0
  %380 = vmatpush1.msra.mxu0 0.0
  %381 = vmatprep.subr.mxu0 0.0
  %382 = vmatpush1.msra.mxu0 0.0
  %383 = vmatprep.subr.mxu0 0.0
  %384 = vmatpush1.msra.mxu0 0.0
  %385 = vmatprep.subr.mxu0 0.0
  %386 = vmatpush1.msra.mxu0 0.0
  %387 = vmatprep.subr.mxu0 0.0
  %388 = vmatpush1.msra.mxu0 0.0
  %389 = vmatprep.subr.mxu0 0.0
  %390 = vmatpush1.msra.mxu0 0.0
  %391 = vmatprep.subr.mxu0 0.0
  %392 = vmatpush1.msra.mxu0 0.0
  %393 = vmatprep.subr.mxu0 0.0
  %394 = vmatpush1.msra.mxu0 0.0
  %395 = vmatprep.subr.mxu0 0.0
  %396 = vmatpush1.msra.mxu0 0.0
  %397 = vmatprep.subr.mxu0 0.0
  %398 = vmatpush1.msra.mxu0 0.0
  %399 = vmatprep.subr.mxu0 0.0
  %400 = vmatpush1.msra.mxu0 0.0
  %401 = vmatprep.subr.mxu0 0.0
  %402 = vmatpush1.msra.mxu0 0.0
  %403 = vmatprep.subr.mxu0 0.0
  %404 = vmatpush1.msra.mxu0 0.0
  %405 = vmatprep.mubr.f32.mxu0 0.0
  %406 = vmatmul.mubr.f32.gmra.mrb[0].mxu0 %v339
  %v407 = vpop.f32.mrb[0].mxu0
  %v408 = vadd.f32 0.0, %v407
  %v409 = vpop.f32.mrb[0].mxu0
  %v410 = vadd.f32 0.0, %v409
  %411 = vdwg.mxu0
  %v414 = vcombine.low %v408, %v410
  %v416 = vunpack.c.l.s4 1983009808
  %v417 = vunpack.c.0.s8 %v416
  %v418 = vlaneseq
  %v419 = vshrl.u32 %v418, 7
  %v420 = vsub.s32 %v417, %v419
  %v421 = vrot.slane %v414, %v420
  %v423 = vadd.f32 %v337, %v421
  %v424 = vxor.u32 %v423, 2147483648
  %v425 = vmul.f32 %v424, 1.442695
  %v426 = vpow.pop %v425
  %v427 = vadd.f32 %v426, 1.0
  %v428 = vrcp.pop %v427
  %v429 = vmul.f32 1.0, %v428
  %v430 = vtanh.pop %v423
  %v431 = vmul.f32 %v429, %v199
  %433 = vrot.lane.b32.xlu0 %v430, 32
  %v434 = vpop.permute.xlu0 %433
  %v436 = vmul.f32 %v429, %v434
  %438 = vrot.lane.b32.xlu0 %v436, 32
  %v439 = vpop.permute.xlu0 %438
  %v441 = vadd.f32 %v431, %v439
  %v442 = vtanh.pop %v441
  %444 = vrot.lane.b32.xlu0 %v442, 32
  %v445 = vpop.permute.xlu0 %444
  %v447 = vmul.f32 %v429, %v445
  %v450 = vunpack.c.l.s4 1983009808
  %v451 = vunpack.c.0.s8 %v450
  %v452 = vlaneseq
  %v453 = vshrl.u32 %v452, 7
  %v454 = vsub.s32 %v451, %v453
  %v455 = vrot.slane %v447, %v454
  %456 = vrot.lane.b32.xlu0 %v455, 64
  %v457 = vpop.permute.xlu0 %456
  %v460 = vunpack.c.l.s4 1983009808
  %v461 = vunpack.c.0.s8 %v460
  %v462 = vlaneseq
  %v463 = vshrl.u32 %v462, 7
  %v464 = vsub.s32 %v461, %v463
  %v465 = vrot.slane %v430, %v464
  %v466 = vcombine.high %v465, %v465
  %467 = vrot.lane.b32.xlu0 %v466, 32
  %v468 = vpop.permute.xlu0 %467
  %v470 = vsel %vm228, %v457, %v468
  %472 = vrot.lane.b32.xlu0 %v335, 64
  %v473 = vpop.permute.xlu0 %472
  %v475 = vsel %vm95, %v470, %v473
  %476 = vmatprep.subr.mxu0 %v42
  %477 = vmatpush1.msra.mxu0 %v41
  %478 = vmatprep.subr.mxu0 %v44
  %479 = vmatpush1.msra.mxu0 %v43
  %480 = vmatprep.subr.mxu0 %v46
  %481 = vmatpush1.msra.mxu0 %v45
  %482 = vmatprep.subr.mxu0 %v48
  %483 = vmatpush1.msra.mxu0 %v47
  %484 = vmatprep.subr.mxu0 %v50
  %485 = vmatpush1.msra.mxu0 %v49
  %486 = vmatprep.subr.mxu0 %v52
  %487 = vmatpush1.msra.mxu0 %v51
  %488 = vmatprep.subr.mxu0 %v54
  %489 = vmatpush1.msra.mxu0 %v53
  %490 = vmatprep.subr.mxu0 %v56
  %491 = vmatpush1.msra.mxu0 %v55
  %492 = vmatprep.subr.mxu0 %v58
  %493 = vmatpush1.msra.mxu0 %v57
  %494 = vmatprep.subr.mxu0 %v60
  %495 = vmatpush1.msra.mxu0 %v59
  %496 = vmatprep.subr.mxu0 %v62
  %497 = vmatpush1.msra.mxu0 %v61
  %498 = vmatprep.subr.mxu0 %v64
  %499 = vmatpush1.msra.mxu0 %v63
  %500 = vmatprep.subr.mxu0 %v66
  %501 = vmatpush1.msra.mxu0 %v65
  %502 = vmatprep.subr.mxu0 %v68
  %503 = vmatpush1.msra.mxu0 %v67
  %504 = vmatprep.subr.mxu0 %v70
  %505 = vmatpush1.msra.mxu0 %v69
  %506 = vmatprep.subr.mxu0 %v72
  %507 = vmatpush1.msra.mxu0 %v71
  %508 = vmatprep.subr.mxu0 0.0
  %509 = vmatpush1.msra.mxu0 0.0
  %510 = vmatprep.subr.mxu0 0.0
  %511 = vmatpush1.msra.mxu0 0.0
  %512 = vmatprep.subr.mxu0 0.0
  %513 = vmatpush1.msra.mxu0 0.0
  %514 = vmatprep.subr.mxu0 0.0
  %515 = vmatpush1.msra.mxu0 0.0
  %516 = vmatprep.subr.mxu0 0.0
  %517 = vmatpush1.msra.mxu0 0.0
  %518 = vmatprep.subr.mxu0 0.0
  %519 = vmatpush1.msra.mxu0 0.0
  %520 = vmatprep.subr.mxu0 0.0
  %521 = vmatpush1.msra.mxu0 0.0
  %522 = vmatprep.subr.mxu0 0.0
  %523 = vmatpush1.msra.mxu0 0.0
  %524 = vmatprep.subr.mxu0 0.0
  %525 = vmatpush1.msra.mxu0 0.0
  %526 = vmatprep.subr.mxu0 0.0
  %527 = vmatpush1.msra.mxu0 0.0
  %528 = vmatprep.subr.mxu0 0.0
  %529 = vmatpush1.msra.mxu0 0.0
  %530 = vmatprep.subr.mxu0 0.0
  %531 = vmatpush1.msra.mxu0 0.0
  %532 = vmatprep.subr.mxu0 0.0
  %533 = vmatpush1.msra.mxu0 0.0
  %534 = vmatprep.subr.mxu0 0.0
  %535 = vmatpush1.msra.mxu0 0.0
  %536 = vmatprep.subr.mxu0 0.0
  %537 = vmatpush1.msra.mxu0 0.0
  %538 = vmatprep.subr.mxu0 0.0
  %539 = vmatpush1.msra.mxu0 0.0
  %540 = vmatprep.mubr.f32.mxu0 0.0
  %541 = vmatmul.mubr.f32.gmra.mrb[0].mxu0 %v475
  %v542 = vpop.f32.mrb[0].mxu0
  %v543 = vadd.f32 %v78, %v542
  %v544 = vpop.f32.mrb[0].mxu0
  %v545 = vadd.f32 %v82, %v544
  %546 = vdwg.mxu0
  %v547 = vxor.u32 %v543, 2147483648
  %v548 = vmul.f32 %v547, 1.442695
  %v549 = vpow.pop %v548
  %v550 = vadd.f32 %v549, 1.0
  %v551 = vrcp.pop %v550
  %v552 = vmul.f32 1.0, %v551
  %v553 = vtanh.pop %v543
  %v554 = vtanh.pop %v545
  %v555 = vmul.f32 %v552, %v320
  %557 = vrot.lane.b32.xlu0 %v553, 32
  %v558 = vpop.permute.xlu0 %557
  %v560 = vmul.f32 %v552, %v558
  %562 = vrot.lane.b32.xlu0 %v560, 32
  %v563 = vpop.permute.xlu0 %562
  %v565 = vadd.f32 %v555, %v563
  %v566 = vtanh.pop %v565
  %568 = vrot.lane.b32.xlu0 %v566, 32
  %v569 = vpop.permute.xlu0 %568
  %v571 = vmul.f32 %v552, %v569
  %573 = vrot.lane.b32.xlu0 %v571, 64
  %v574 = vpop.permute.xlu0 %573
  %577 = vrot.lane.b32.xlu0 %v554, 32
  %v578 = vpop.permute.xlu0 %577
  %v580 = vsel %vm228, %v574, %v578
  %s581 = scalar_lea.vmem %s0, 8
  %v582 = vld [vmem:[%s581] sm:$0xf]
  %v584 = vsel %vm95, %v470, 0
  %586 = vmatprep.subr.mxu0 %v26
  %587 = vmatpush1.msra.mxu0 %v25
  %588 = vmatprep.subr.mxu0 %v28
  %589 = vmatpush1.msra.mxu0 %v27
  %590 = vmatprep.subr.mxu0 %v30
  %591 = vmatpush1.msra.mxu0 %v29
  %592 = vmatprep.subr.mxu0 %v32
  %593 = vmatpush1.msra.mxu0 %v31
  %594 = vmatprep.subr.mxu0 %v34
  %595 = vmatpush1.msra.mxu0 %v33
  %596 = vmatprep.subr.mxu0 %v36
  %597 = vmatpush1.msra.mxu0 %v35
  %598 = vmatprep.subr.mxu0 %v38
  %599 = vmatpush1.msra.mxu0 %v37
  %600 = vmatprep.subr.mxu0 %v40
  %601 = vmatpush1.msra.mxu0 %v39
  %602 = vmatprep.subr.mxu0 0.0
  %603 = vmatpush1.msra.mxu0 0.0
  %604 = vmatprep.subr.mxu0 0.0
  %605 = vmatpush1.msra.mxu0 0.0
  %606 = vmatprep.subr.mxu0 0.0
  %607 = vmatpush1.msra.mxu0 0.0
  %608 = vmatprep.subr.mxu0 0.0
  %609 = vmatpush1.msra.mxu0 0.0
  %610 = vmatprep.subr.mxu0 0.0
  %611 = vmatpush1.msra.mxu0 0.0
  %612 = vmatprep.subr.mxu0 0.0
  %613 = vmatpush1.msra.mxu0 0.0
  %614 = vmatprep.subr.mxu0 0.0
  %615 = vmatpush1.msra.mxu0 0.0
  %616 = vmatprep.subr.mxu0 0.0
  %617 = vmatpush1.msra.mxu0 0.0
  %618 = vmatprep.subr.mxu0 0.0
  %619 = vmatpush1.msra.mxu0 0.0
  %620 = vmatprep.subr.mxu0 0.0
  %621 = vmatpush1.msra.mxu0 0.0
  %622 = vmatprep.subr.mxu0 0.0
  %623 = vmatpush1.msra.mxu0 0.0
  %624 = vmatprep.subr.mxu0 0.0
  %625 = vmatpush1.msra.mxu0 0.0
  %626 = vmatprep.subr.mxu0 0.0
  %627 = vmatpush1.msra.mxu0 0.0
  %628 = vmatprep.subr.mxu0 0.0
  %629 = vmatpush1.msra.mxu0 0.0
  %630 = vmatprep.subr.mxu0 0.0
  %631 = vmatpush1.msra.mxu0 0.0
  %632 = vmatprep.subr.mxu0 0.0
  %633 = vmatpush1.msra.mxu0 0.0
  %634 = vmatprep.subr.mxu0 0.0
  %635 = vmatpush1.msra.mxu0 0.0
  %636 = vmatprep.subr.mxu0 0.0
  %637 = vmatpush1.msra.mxu0 0.0
  %638 = vmatprep.subr.mxu0 0.0
  %639 = vmatpush1.msra.mxu0 0.0
  %640 = vmatprep.subr.mxu0 0.0
  %641 = vmatpush1.msra.mxu0 0.0
  %642 = vmatprep.subr.mxu0 0.0
  %643 = vmatpush1.msra.mxu0 0.0
  %644 = vmatprep.subr.mxu0 0.0
  %645 = vmatpush1.msra.mxu0 0.0
  %646 = vmatprep.subr.mxu0 0.0
  %647 = vmatpush1.msra.mxu0 0.0
  %648 = vmatprep.subr.mxu0 0.0
  %649 = vmatpush1.msra.mxu0 0.0
  %650 = vmatprep.mubr.f32.mxu0 0.0
  %651 = vmatmul.mubr.f32.gmra.mrb[0].mxu0 %v584
  %v652 = vpop.f32.mrb[0].mxu0
  %v653 = vadd.f32 0.0, %v652
  %v654 = vpop.f32.mrb[0].mxu0
  %v655 = vadd.f32 0.0, %v654
  %656 = vdwg.mxu0
  %v659 = vcombine.low %v653, %v655
  %v661 = vunpack.c.l.s4 1983009808
  %v662 = vunpack.c.0.s8 %v661
  %v663 = vlaneseq
  %v664 = vshrl.u32 %v663, 7
  %v665 = vsub.s32 %v662, %v664
  %v666 = vrot.slane %v659, %v665
  %v668 = vadd.f32 %v582, %v666
  %v669 = vxor.u32 %v668, 2147483648
  %v670 = vmul.f32 %v669, 1.442695
  %v671 = vpow.pop %v670
  %v672 = vadd.f32 %v671, 1.0
  %v673 = vrcp.pop %v672
  %v674 = vmul.f32 1.0, %v673
  %v675 = vtanh.pop %v668
  %v676 = vmul.f32 %v674, %v441
  %678 = vrot.lane.b32.xlu0 %v675, 32
  %v679 = vpop.permute.xlu0 %678
  %v681 = vmul.f32 %v674, %v679
  %683 = vrot.lane.b32.xlu0 %v681, 32
  %v684 = vpop.permute.xlu0 %683
  %v686 = vadd.f32 %v676, %v684
  %v687 = vtanh.pop %v686
  %689 = vrot.lane.b32.xlu0 %v687, 32
  %v690 = vpop.permute.xlu0 %689
  %v692 = vmul.f32 %v674, %v690
  %v695 = vunpack.c.l.s4 1983009808
  %v696 = vunpack.c.0.s8 %v695
  %v697 = vlaneseq
  %v698 = vshrl.u32 %v697, 7
  %v699 = vsub.s32 %v696, %v698
  %v700 = vrot.slane %v692, %v699
  %701 = vrot.lane.b32.xlu0 %v700, 64
  %v702 = vpop.permute.xlu0 %701
  %v705 = vunpack.c.l.s4 1983009808
  %v706 = vunpack.c.0.s8 %v705
  %v707 = vlaneseq
  %v708 = vshrl.u32 %v707, 7
  %v709 = vsub.s32 %v706, %v708
  %v710 = vrot.slane %v675, %v709
  %v711 = vcombine.high %v710, %v710
  %712 = vrot.lane.b32.xlu0 %v711, 32
  %v713 = vpop.permute.xlu0 %712
  %v715 = vsel %vm228, %v702, %v713
  %717 = vrot.lane.b32.xlu0 %v580, 64
  %v718 = vpop.permute.xlu0 %717
  %v720 = vsel %vm95, %v715, %v718
  %721 = vmatprep.subr.mxu0 %v42
  %722 = vmatpush1.msra.mxu0 %v41
  %723 = vmatprep.subr.mxu0 %v44
  %724 = vmatpush1.msra.mxu0 %v43
  %725 = vmatprep.subr.mxu0 %v46
  %726 = vmatpush1.msra.mxu0 %v45
  %727 = vmatprep.subr.mxu0 %v48
  %728 = vmatpush1.msra.mxu0 %v47
  %729 = vmatprep.subr.mxu0 %v50
  %730 = vmatpush1.msra.mxu0 %v49
  %731 = vmatprep.subr.mxu0 %v52
  %732 = vmatpush1.msra.mxu0 %v51
  %733 = vmatprep.subr.mxu0 %v54
  %734 = vmatpush1.msra.mxu0 %v53
  %735 = vmatprep.subr.mxu0 %v56
  %736 = vmatpush1.msra.mxu0 %v55
  %737 = vmatprep.subr.mxu0 %v58
  %738 = vmatpush1.msra.mxu0 %v57
  %739 = vmatprep.subr.mxu0 %v60
  %740 = vmatpush1.msra.mxu0 %v59
  %741 = vmatprep.subr.mxu0 %v62
  %742 = vmatpush1.msra.mxu0 %v61
  %743 = vmatprep.subr.mxu0 %v64
  %744 = vmatpush1.msra.mxu0 %v63
  %745 = vmatprep.subr.mxu0 %v66
  %746 = vmatpush1.msra.mxu0 %v65
  %747 = vmatprep.subr.mxu0 %v68
  %748 = vmatpush1.msra.mxu0 %v67
  %749 = vmatprep.subr.mxu0 %v70
  %750 = vmatpush1.msra.mxu0 %v69
  %751 = vmatprep.subr.mxu0 %v72
  %752 = vmatpush1.msra.mxu0 %v71
  %753 = vmatprep.subr.mxu0 0.0
  %754 = vmatpush1.msra.mxu0 0.0
  %755 = vmatprep.subr.mxu0 0.0
  %756 = vmatpush1.msra.mxu0 0.0
  %757 = vmatprep.subr.mxu0 0.0
  %758 = vmatpush1.msra.mxu0 0.0
  %759 = vmatprep.subr.mxu0 0.0
  %760 = vmatpush1.msra.mxu0 0.0
  %761 = vmatprep.subr.mxu0 0.0
  %762 = vmatpush1.msra.mxu0 0.0
  %763 = vmatprep.subr.mxu0 0.0
  %764 = vmatpush1.msra.mxu0 0.0
  %765 = vmatprep.subr.mxu0 0.0
  %766 = vmatpush1.msra.mxu0 0.0
  %767 = vmatprep.subr.mxu0 0.0
  %768 = vmatpush1.msra.mxu0 0.0
  %769 = vmatprep.subr.mxu0 0.0
  %770 = vmatpush1.msra.mxu0 0.0
  %771 = vmatprep.subr.mxu0 0.0
  %772 = vmatpush1.msra.mxu0 0.0
  %773 = vmatprep.subr.mxu0 0.0
  %774 = vmatpush1.msra.mxu0 0.0
  %775 = vmatprep.subr.mxu0 0.0
  %776 = vmatpush1.msra.mxu0 0.0
  %777 = vmatprep.subr.mxu0 0.0
  %778 = vmatpush1.msra.mxu0 0.0
  %779 = vmatprep.subr.mxu0 0.0
  %780 = vmatpush1.msra.mxu0 0.0
  %781 = vmatprep.subr.mxu0 0.0
  %782 = vmatpush1.msra.mxu0 0.0
  %783 = vmatprep.subr.mxu0 0.0
  %784 = vmatpush1.msra.mxu0 0.0
  %785 = vmatprep.mubr.f32.mxu0 0.0
  %786 = vmatmul.mubr.f32.gmra.mrb[0].mxu0 %v720
  %v787 = vpop.f32.mrb[0].mxu0
  %v788 = vadd.f32 %v78, %v787
  %v789 = vpop.f32.mrb[0].mxu0
  %v790 = vadd.f32 %v82, %v789
  %791 = vdwg.mxu0
  %v792 = vxor.u32 %v788, 2147483648
  %v793 = vmul.f32 %v792, 1.442695
  %v794 = vpow.pop %v793
  %v795 = vadd.f32 %v794, 1.0
  %v796 = vrcp.pop %v795
  %v797 = vmul.f32 1.0, %v796
  %v798 = vtanh.pop %v788
  %v799 = vtanh.pop %v790
  %v800 = vmul.f32 %v797, %v565
  %802 = vrot.lane.b32.xlu0 %v798, 32
  %v803 = vpop.permute.xlu0 %802
  %v805 = vmul.f32 %v797, %v803
  %807 = vrot.lane.b32.xlu0 %v805, 32
  %v808 = vpop.permute.xlu0 %807
  %v810 = vadd.f32 %v800, %v808
  %v811 = vtanh.pop %v810
  %813 = vrot.lane.b32.xlu0 %v811, 32
  %v814 = vpop.permute.xlu0 %813
  %v816 = vmul.f32 %v797, %v814
  %818 = vrot.lane.b32.xlu0 %v816, 64
  %v819 = vpop.permute.xlu0 %818
  %822 = vrot.lane.b32.xlu0 %v799, 32
  %v823 = vpop.permute.xlu0 %822
  %v825 = vsel %vm228, %v819, %v823
  %s826 = scalar_lea.vmem %s0, 12
  %v827 = vld [vmem:[%s826] sm:$0xf]
  %v829 = vsel %vm95, %v715, 0
  %831 = vmatprep.subr.mxu0 %v26
  %832 = vmatpush1.msra.mxu0 %v25
  %833 = vmatprep.subr.mxu0 %v28
  %834 = vmatpush1.msra.mxu0 %v27
  %835 = vmatprep.subr.mxu0 %v30
  %836 = vmatpush1.msra.mxu0 %v29
  %837 = vmatprep.subr.mxu0 %v32
  %838 = vmatpush1.msra.mxu0 %v31
  %839 = vmatprep.subr.mxu0 %v34
  %840 = vmatpush1.msra.mxu0 %v33
  %841 = vmatprep.subr.mxu0 %v36
  %842 = vmatpush1.msra.mxu0 %v35
  %843 = vmatprep.subr.mxu0 %v38
  %844 = vmatpush1.msra.mxu0 %v37
  %845 = vmatprep.subr.mxu0 %v40
  %846 = vmatpush1.msra.mxu0 %v39
  %847 = vmatprep.subr.mxu0 0.0
  %848 = vmatpush1.msra.mxu0 0.0
  %849 = vmatprep.subr.mxu0 0.0
  %850 = vmatpush1.msra.mxu0 0.0
  %851 = vmatprep.subr.mxu0 0.0
  %852 = vmatpush1.msra.mxu0 0.0
  %853 = vmatprep.subr.mxu0 0.0
  %854 = vmatpush1.msra.mxu0 0.0
  %855 = vmatprep.subr.mxu0 0.0
  %856 = vmatpush1.msra.mxu0 0.0
  %857 = vmatprep.subr.mxu0 0.0
  %858 = vmatpush1.msra.mxu0 0.0
  %859 = vmatprep.subr.mxu0 0.0
  %860 = vmatpush1.msra.mxu0 0.0
  %861 = vmatprep.subr.mxu0 0.0
  %862 = vmatpush1.msra.mxu0 0.0
  %863 = vmatprep.subr.mxu0 0.0
  %864 = vmatpush1.msra.mxu0 0.0
  %865 = vmatprep.subr.mxu0 0.0
  %866 = vmatpush1.msra.mxu0 0.0
  %867 = vmatprep.subr.mxu0 0.0
  %868 = vmatpush1.msra.mxu0 0.0
  %869 = vmatprep.subr.mxu0 0.0
  %870 = vmatpush1.msra.mxu0 0.0
  %871 = vmatprep.subr.mxu0 0.0
  %872 = vmatpush1.msra.mxu0 0.0
  %873 = vmatprep.subr.mxu0 0.0
  %874 = vmatpush1.msra.mxu0 0.0
  %875 = vmatprep.subr.mxu0 0.0
  %876 = vmatpush1.msra.mxu0 0.0
  %877 = vmatprep.subr.mxu0 0.0
  %878 = vmatpush1.msra.mxu0 0.0
  %879 = vmatprep.subr.mxu0 0.0
  %880 = vmatpush1.msra.mxu0 0.0
  %881 = vmatprep.subr.mxu0 0.0
  %882 = vmatpush1.msra.mxu0 0.0
  %883 = vmatprep.subr.mxu0 0.0
  %884 = vmatpush1.msra.mxu0 0.0
  %885 = vmatprep.subr.mxu0 0.0
  %886 = vmatpush1.msra.mxu0 0.0
  %887 = vmatprep.subr.mxu0 0.0
  %888 = vmatpush1.msra.mxu0 0.0
  %889 = vmatprep.subr.mxu0 0.0
  %890 = vmatpush1.msra.mxu0 0.0
  %891 = vmatprep.subr.mxu0 0.0
  %892 = vmatpush1.msra.mxu0 0.0
  %893 = vmatprep.subr.mxu0 0.0
  %894 = vmatpush1.msra.mxu0 0.0
  %895 = vmatprep.mubr.f32.mxu0 0.0
  %896 = vmatmul.mubr.f32.gmra.mrb[0].mxu0 %v829
  %v897 = vpop.f32.mrb[0].mxu0
  %v898 = vadd.f32 0.0, %v897
  %v899 = vpop.f32.mrb[0].mxu0
  %v900 = vadd.f32 0.0, %v899
  %901 = vdwg.mxu0
  %v904 = vcombine.low %v898, %v900
  %v906 = vunpack.c.l.s4 1983009808
  %v907 = vunpack.c.0.s8 %v906
  %v908 = vlaneseq
  %v909 = vshrl.u32 %v908, 7
  %v910 = vsub.s32 %v907, %v909
  %v911 = vrot.slane %v904, %v910
  %v913 = vadd.f32 %v827, %v911
  %v914 = vxor.u32 %v913, 2147483648
  %v915 = vmul.f32 %v914, 1.442695
  %v916 = vpow.pop %v915
  %v917 = vadd.f32 %v916, 1.0
  %v918 = vrcp.pop %v917
  %v919 = vmul.f32 1.0, %v918
  %v920 = vtanh.pop %v913
  %v921 = vmul.f32 %v919, %v686
  %923 = vrot.lane.b32.xlu0 %v920, 32
  %v924 = vpop.permute.xlu0 %923
  %v926 = vmul.f32 %v919, %v924
  %928 = vrot.lane.b32.xlu0 %v926, 32
  %v929 = vpop.permute.xlu0 %928
  %v931 = vadd.f32 %v921, %v929
  %v932 = vtanh.pop %v931
  %934 = vrot.lane.b32.xlu0 %v932, 32
  %v935 = vpop.permute.xlu0 %934
  %v937 = vmul.f32 %v919, %v935
  %v940 = vunpack.c.l.s4 1983009808
  %v941 = vunpack.c.0.s8 %v940
  %v942 = vlaneseq
  %v943 = vshrl.u32 %v942, 7
  %v944 = vsub.s32 %v941, %v943
  %v945 = vrot.slane %v937, %v944
  %946 = vrot.lane.b32.xlu0 %v945, 64
  %v947 = vpop.permute.xlu0 %946
  %v950 = vunpack.c.l.s4 1983009808
  %v951 = vunpack.c.0.s8 %v950
  %v952 = vlaneseq
  %v953 = vshrl.u32 %v952, 7
  %v954 = vsub.s32 %v951, %v953
  %v955 = vrot.slane %v920, %v954
  %v956 = vcombine.high %v955, %v955
  %957 = vrot.lane.b32.xlu0 %v956, 32
  %v958 = vpop.permute.xlu0 %957
  %v960 = vsel %vm228, %v947, %v958
  %962 = vrot.lane.b32.xlu0 %v825, 64
  %v963 = vpop.permute.xlu0 %962
  %v965 = vsel %vm95, %v960, %v963
  %966 = vmatprep.subr.mxu0 %v42
  %967 = vmatpush1.msra.mxu0 %v41
  %968 = vmatprep.subr.mxu0 %v44
  %969 = vmatpush1.msra.mxu0 %v43
  %970 = vmatprep.subr.mxu0 %v46
  %971 = vmatpush1.msra.mxu0 %v45
  %972 = vmatprep.subr.mxu0 %v48
  %973 = vmatpush1.msra.mxu0 %v47
  %974 = vmatprep.subr.mxu0 %v50
  %975 = vmatpush1.msra.mxu0 %v49
  %976 = vmatprep.subr.mxu0 %v52
  %977 = vmatpush1.msra.mxu0 %v51
  %978 = vmatprep.subr.mxu0 %v54
  %979 = vmatpush1.msra.mxu0 %v53
  %980 = vmatprep.subr.mxu0 %v56
  %981 = vmatpush1.msra.mxu0 %v55
  %982 = vmatprep.subr.mxu0 %v58
  %983 = vmatpush1.msra.mxu0 %v57
  %984 = vmatprep.subr.mxu0 %v60
  %985 = vmatpush1.msra.mxu0 %v59
  %986 = vmatprep.subr.mxu0 %v62
  %987 = vmatpush1.msra.mxu0 %v61
  %988 = vmatprep.subr.mxu0 %v64
  %989 = vmatpush1.msra.mxu0 %v63
  %990 = vmatprep.subr.mxu0 %v66
  %991 = vmatpush1.msra.mxu0 %v65
  %992 = vmatprep.subr.mxu0 %v68
  %993 = vmatpush1.msra.mxu0 %v67
  %994 = vmatprep.subr.mxu0 %v70
  %995 = vmatpush1.msra.mxu0 %v69
  %996 = vmatprep.subr.mxu0 %v72
  %997 = vmatpush1.msra.mxu0 %v71
  %998 = vmatprep.subr.mxu0 0.0
  %999 = vmatpush1.msra.mxu0 0.0
  %1000 = vmatprep.subr.mxu0 0.0
  %1001 = vmatpush1.msra.mxu0 0.0
  %1002 = vmatprep.subr.mxu0 0.0
  %1003 = vmatpush1.msra.mxu0 0.0
  %1004 = vmatprep.subr.mxu0 0.0
  %1005 = vmatpush1.msra.mxu0 0.0
  %1006 = vmatprep.subr.mxu0 0.0
  %1007 = vmatpush1.msra.mxu0 0.0
  %1008 = vmatprep.subr.mxu0 0.0
  %1009 = vmatpush1.msra.mxu0 0.0
  %1010 = vmatprep.subr.mxu0 0.0
  %1011 = vmatpush1.msra.mxu0 0.0
  %1012 = vmatprep.subr.mxu0 0.0
  %1013 = vmatpush1.msra.mxu0 0.0
  %1014 = vmatprep.subr.mxu0 0.0
  %1015 = vmatpush1.msra.mxu0 0.0
  %1016 = vmatprep.subr.mxu0 0.0
  %1017 = vmatpush1.msra.mxu0 0.0
  %1018 = vmatprep.subr.mxu0 0.0
  %1019 = vmatpush1.msra.mxu0 0.0
  %1020 = vmatprep.subr.mxu0 0.0
  %1021 = vmatpush1.msra.mxu0 0.0
  %1022 = vmatprep.subr.mxu0 0.0
  %1023 = vmatpush1.msra.mxu0 0.0
  %1024 = vmatprep.subr.mxu0 0.0
  %1025 = vmatpush1.msra.mxu0 0.0
  %1026 = vmatprep.subr.mxu0 0.0
  %1027 = vmatpush1.msra.mxu0 0.0
  %1028 = vmatprep.subr.mxu0 0.0
  %1029 = vmatpush1.msra.mxu0 0.0
  %1030 = vmatprep.mubr.f32.mxu0 0.0
  %1031 = vmatmul.mubr.f32.gmra.mrb[0].mxu0 %v965
  %v1032 = vpop.f32.mrb[0].mxu0
  %v1033 = vadd.f32 %v78, %v1032
  %v1034 = vpop.f32.mrb[0].mxu0
  %v1035 = vadd.f32 %v82, %v1034
  %1036 = vdwg.mxu0
  %v1037 = vxor.u32 %v1033, 2147483648
  %v1038 = vmul.f32 %v1037, 1.442695
  %v1039 = vpow.pop %v1038
  %v1040 = vadd.f32 %v1039, 1.0
  %v1041 = vrcp.pop %v1040
  %v1042 = vmul.f32 1.0, %v1041
  %v1043 = vtanh.pop %v1033
  %v1044 = vtanh.pop %v1035
  %v1045 = vmul.f32 %v1042, %v810
  %1047 = vrot.lane.b32.xlu0 %v1043, 32
  %v1048 = vpop.permute.xlu0 %1047
  %v1050 = vmul.f32 %v1042, %v1048
  %1052 = vrot.lane.b32.xlu0 %v1050, 32
  %v1053 = vpop.permute.xlu0 %1052
  %v1055 = vadd.f32 %v1045, %v1053
  %v1056 = vtanh.pop %v1055
  %1058 = vrot.lane.b32.xlu0 %v1056, 32
  %v1059 = vpop.permute.xlu0 %1058
  %v1061 = vmul.f32 %v1042, %v1059
  %1063 = vrot.lane.b32.xlu0 %v1061, 64
  %v1064 = vpop.permute.xlu0 %1063
  %1067 = vrot.lane.b32.xlu0 %v1044, 32
  %v1068 = vpop.permute.xlu0 %1067
  %v1070 = vsel %vm228, %v1064, %v1068
  %s1071 = scalar_lea.vmem %s0, 16
  %v1072 = vld [vmem:[%s1071] sm:$0xf]
  %v1074 = vsel %vm95, %v960, 0
  %1076 = vmatprep.subr.mxu0 %v26
  %1077 = vmatpush1.msra.mxu0 %v25
  %1078 = vmatprep.subr.mxu0 %v28
  %1079 = vmatpush1.msra.mxu0 %v27
  %1080 = vmatprep.subr.mxu0 %v30
  %1081 = vmatpush1.msra.mxu0 %v29
  %1082 = vmatprep.subr.mxu0 %v32
  %1083 = vmatpush1.msra.mxu0 %v31
  %1084 = vmatprep.subr.mxu0 %v34
  %1085 = vmatpush1.msra.mxu0 %v33
  %1086 = vmatprep.subr.mxu0 %v36
  %1087 = vmatpush1.msra.mxu0 %v35
  %1088 = vmatprep.subr.mxu0 %v38
  %1089 = vmatpush1.msra.mxu0 %v37
  %1090 = vmatprep.subr.mxu0 %v40
  %1091 = vmatpush1.msra.mxu0 %v39
  %1092 = vmatprep.subr.mxu0 0.0
  %1093 = vmatpush1.msra.mxu0 0.0
  %1094 = vmatprep.subr.mxu0 0.0
  %1095 = vmatpush1.msra.mxu0 0.0
  %1096 = vmatprep.subr.mxu0 0.0
  %1097 = vmatpush1.msra.mxu0 0.0
  %1098 = vmatprep.subr.mxu0 0.0
  %1099 = vmatpush1.msra.mxu0 0.0
  %1100 = vmatprep.subr.mxu0 0.0
  %1101 = vmatpush1.msra.mxu0 0.0
  %1102 = vmatprep.subr.mxu0 0.0
  %1103 = vmatpush1.msra.mxu0 0.0
  %1104 = vmatprep.subr.mxu0 0.0
  %1105 = vmatpush1.msra.mxu0 0.0
  %1106 = vmatprep.subr.mxu0 0.0
  %1107 = vmatpush1.msra.mxu0 0.0
  %1108 = vmatprep.subr.mxu0 0.0
  %1109 = vmatpush1.msra.mxu0 0.0
  %1110 = vmatprep.subr.mxu0 0.0
  %1111 = vmatpush1.msra.mxu0 0.0
  %1112 = vmatprep.subr.mxu0 0.0
  %1113 = vmatpush1.msra.mxu0 0.0
  %1114 = vmatprep.subr.mxu0 0.0
  %1115 = vmatpush1.msra.mxu0 0.0
  %1116 = vmatprep.subr.mxu0 0.0
  %1117 = vmatpush1.msra.mxu0 0.0
  %1118 = vmatprep.subr.mxu0 0.0
  %1119 = vmatpush1.msra.mxu0 0.0
  %1120 = vmatprep.subr.mxu0 0.0
  %1121 = vmatpush1.msra.mxu0 0.0
  %1122 = vmatprep.subr.mxu0 0.0
  %1123 = vmatpush1.msra.mxu0 0.0
  %1124 = vmatprep.subr.mxu0 0.0
  %1125 = vmatpush1.msra.mxu0 0.0
  %1126 = vmatprep.subr.mxu0 0.0
  %1127 = vmatpush1.msra.mxu0 0.0
  %1128 = vmatprep.subr.mxu0 0.0
  %1129 = vmatpush1.msra.mxu0 0.0
  %1130 = vmatprep.subr.mxu0 0.0
  %1131 = vmatpush1.msra.mxu0 0.0
  %1132 = vmatprep.subr.mxu0 0.0
  %1133 = vmatpush1.msra.mxu0 0.0
  %1134 = vmatprep.subr.mxu0 0.0
  %1135 = vmatpush1.msra.mxu0 0.0
  %1136 = vmatprep.subr.mxu0 0.0
  %1137 = vmatpush1.msra.mxu0 0.0
  %1138 = vmatprep.subr.mxu0 0.0
  %1139 = vmatpush1.msra.mxu0 0.0
  %1140 = vmatprep.mubr.f32.mxu0 0.0
  %1141 = vmatmul.mubr.f32.gmra.mrb[0].mxu0 %v1074
  %v1142 = vpop.f32.mrb[0].mxu0
  %v1143 = vadd.f32 0.0, %v1142
  %v1144 = vpop.f32.mrb[0].mxu0
  %v1145 = vadd.f32 0.0, %v1144
  %1146 = vdwg.mxu0
  %v1149 = vcombine.low %v1143, %v1145
  %v1151 = vunpack.c.l.s4 1983009808
  %v1152 = vunpack.c.0.s8 %v1151
  %v1153 = vlaneseq
  %v1154 = vshrl.u32 %v1153, 7
  %v1155 = vsub.s32 %v1152, %v1154
  %v1156 = vrot.slane %v1149, %v1155
  %v1158 = vadd.f32 %v1072, %v1156
  %v1159 = vxor.u32 %v1158, 2147483648
  %v1160 = vmul.f32 %v1159, 1.442695
  %v1161 = vpow.pop %v1160
  %v1162 = vadd.f32 %v1161, 1.0
  %v1163 = vrcp.pop %v1162
  %v1164 = vmul.f32 1.0, %v1163
  %v1165 = vtanh.pop %v1158
  %v1166 = vmul.f32 %v1164, %v931
  %1168 = vrot.lane.b32.xlu0 %v1165, 32
  %v1169 = vpop.permute.xlu0 %1168
  %v1171 = vmul.f32 %v1164, %v1169
  %1173 = vrot.lane.b32.xlu0 %v1171, 32
  %v1174 = vpop.permute.xlu0 %1173
  %v1176 = vadd.f32 %v1166, %v1174
  %v1177 = vtanh.pop %v1176
  %1179 = vrot.lane.b32.xlu0 %v1177, 32
  %v1180 = vpop.permute.xlu0 %1179
  %v1182 = vmul.f32 %v1164, %v1180
  %v1185 = vunpack.c.l.s4 1983009808
  %v1186 = vunpack.c.0.s8 %v1185
  %v1187 = vlaneseq
  %v1188 = vshrl.u32 %v1187, 7
  %v1189 = vsub.s32 %v1186, %v1188
  %v1190 = vrot.slane %v1182, %v1189
  %1191 = vrot.lane.b32.xlu0 %v1190, 64
  %v1192 = vpop.permute.xlu0 %1191
  %v1195 = vunpack.c.l.s4 1983009808
  %v1196 = vunpack.c.0.s8 %v1195
  %v1197 = vlaneseq
  %v1198 = vshrl.u32 %v1197, 7
  %v1199 = vsub.s32 %v1196, %v1198
  %v1200 = vrot.slane %v1165, %v1199
  %v1201 = vcombine.high %v1200, %v1200
  %1202 = vrot.lane.b32.xlu0 %v1201, 32
  %v1203 = vpop.permute.xlu0 %1202
  %v1205 = vsel %vm228, %v1192, %v1203
  %1207 = vrot.lane.b32.xlu0 %v1070, 64
  %v1208 = vpop.permute.xlu0 %1207
  %v1210 = vsel %vm95, %v1205, %v1208
  %1211 = vmatprep.subr.mxu0 %v42
  %1212 = vmatpush1.msra.mxu0 %v41
  %1213 = vmatprep.subr.mxu0 %v44
  %1214 = vmatpush1.msra.mxu0 %v43
  %1215 = vmatprep.subr.mxu0 %v46
  %1216 = vmatpush1.msra.mxu0 %v45
  %1217 = vmatprep.subr.mxu0 %v48
  %1218 = vmatpush1.msra.mxu0 %v47
  %1219 = vmatprep.subr.mxu0 %v50
  %1220 = vmatpush1.msra.mxu0 %v49
  %1221 = vmatprep.subr.mxu0 %v52
  %1222 = vmatpush1.msra.mxu0 %v51
  %1223 = vmatprep.subr.mxu0 %v54
  %1224 = vmatpush1.msra.mxu0 %v53
  %1225 = vmatprep.subr.mxu0 %v56
  %1226 = vmatpush1.msra.mxu0 %v55
  %1227 = vmatprep.subr.mxu0 %v58
  %1228 = vmatpush1.msra.mxu0 %v57
  %1229 = vmatprep.subr.mxu0 %v60
  %1230 = vmatpush1.msra.mxu0 %v59
  %1231 = vmatprep.subr.mxu0 %v62
  %1232 = vmatpush1.msra.mxu0 %v61
  %1233 = vmatprep.subr.mxu0 %v64
  %1234 = vmatpush1.msra.mxu0 %v63
  %1235 = vmatprep.subr.mxu0 %v66
  %1236 = vmatpush1.msra.mxu0 %v65
  %1237 = vmatprep.subr.mxu0 %v68
  %1238 = vmatpush1.msra.mxu0 %v67
  %1239 = vmatprep.subr.mxu0 %v70
  %1240 = vmatpush1.msra.mxu0 %v69
  %1241 = vmatprep.subr.mxu0 %v72
  %1242 = vmatpush1.msra.mxu0 %v71
  %1243 = vmatprep.subr.mxu0 0.0
  %1244 = vmatpush1.msra.mxu0 0.0
  %1245 = vmatprep.subr.mxu0 0.0
  %1246 = vmatpush1.msra.mxu0 0.0
  %1247 = vmatprep.subr.mxu0 0.0
  %1248 = vmatpush1.msra.mxu0 0.0
  %1249 = vmatprep.subr.mxu0 0.0
  %1250 = vmatpush1.msra.mxu0 0.0
  %1251 = vmatprep.subr.mxu0 0.0
  %1252 = vmatpush1.msra.mxu0 0.0
  %1253 = vmatprep.subr.mxu0 0.0
  %1254 = vmatpush1.msra.mxu0 0.0
  %1255 = vmatprep.subr.mxu0 0.0
  %1256 = vmatpush1.msra.mxu0 0.0
  %1257 = vmatprep.subr.mxu0 0.0
  %1258 = vmatpush1.msra.mxu0 0.0
  %1259 = vmatprep.subr.mxu0 0.0
  %1260 = vmatpush1.msra.mxu0 0.0
  %1261 = vmatprep.subr.mxu0 0.0
  %1262 = vmatpush1.msra.mxu0 0.0
  %1263 = vmatprep.subr.mxu0 0.0
  %1264 = vmatpush1.msra.mxu0 0.0
  %1265 = vmatprep.subr.mxu0 0.0
  %1266 = vmatpush1.msra.mxu0 0.0
  %1267 = vmatprep.subr.mxu0 0.0
  %1268 = vmatpush1.msra.mxu0 0.0
  %1269 = vmatprep.subr.mxu0 0.0
  %1270 = vmatpush1.msra.mxu0 0.0
  %1271 = vmatprep.subr.mxu0 0.0
  %1272 = vmatpush1.msra.mxu0 0.0
  %1273 = vmatprep.subr.mxu0 0.0
  %1274 = vmatpush1.msra.mxu0 0.0
  %1275 = vmatprep.mubr.f32.mxu0 0.0
  %1276 = vmatmul.mubr.f32.gmra.mrb[0].mxu0 %v1210
  %v1277 = vpop.f32.mrb[0].mxu0
  %v1278 = vadd.f32 %v78, %v1277
  %v1279 = vpop.f32.mrb[0].mxu0
  %v1280 = vadd.f32 %v82, %v1279
  %1281 = vdwg.mxu0
  %v1282 = vxor.u32 %v1278, 2147483648
  %v1283 = vmul.f32 %v1282, 1.442695
  %v1284 = vpow.pop %v1283
  %v1285 = vadd.f32 %v1284, 1.0
  %v1286 = vrcp.pop %v1285
  %v1287 = vmul.f32 1.0, %v1286
  %v1288 = vtanh.pop %v1278
  %v1289 = vtanh.pop %v1280
  %v1290 = vmul.f32 %v1287, %v1055
  %1292 = vrot.lane.b32.xlu0 %v1288, 32
  %v1293 = vpop.permute.xlu0 %1292
  %v1295 = vmul.f32 %v1287, %v1293
  %1297 = vrot.lane.b32.xlu0 %v1295, 32
  %v1298 = vpop.permute.xlu0 %1297
  %v1300 = vadd.f32 %v1290, %v1298
  %v1301 = vtanh.pop %v1300
  %1303 = vrot.lane.b32.xlu0 %v1301, 32
  %v1304 = vpop.permute.xlu0 %1303
  %v1306 = vmul.f32 %v1287, %v1304
  %1308 = vrot.lane.b32.xlu0 %v1306, 64
  %v1309 = vpop.permute.xlu0 %1308
  %1312 = vrot.lane.b32.xlu0 %v1289, 32
  %v1313 = vpop.permute.xlu0 %1312
  %v1315 = vsel %vm228, %v1309, %v1313
  %s1316 = scalar_lea.vmem %s0, 20
  %v1317 = vld [vmem:[%s1316] sm:$0xf]
  %v1319 = vsel %vm95, %v1205, 0
  %1321 = vmatprep.subr.mxu0 %v26
  %1322 = vmatpush1.msra.mxu0 %v25
  %1323 = vmatprep.subr.mxu0 %v28
  %1324 = vmatpush1.msra.mxu0 %v27
  %1325 = vmatprep.subr.mxu0 %v30
  %1326 = vmatpush1.msra.mxu0 %v29
  %1327 = vmatprep.subr.mxu0 %v32
  %1328 = vmatpush1.msra.mxu0 %v31
  %1329 = vmatprep.subr.mxu0 %v34
  %1330 = vmatpush1.msra.mxu0 %v33
  %1331 = vmatprep.subr.mxu0 %v36
  %1332 = vmatpush1.msra.mxu0 %v35
  %1333 = vmatprep.subr.mxu0 %v38
  %1334 = vmatpush1.msra.mxu0 %v37
  %1335 = vmatprep.subr.mxu0 %v40
  %1336 = vmatpush1.msra.mxu0 %v39
  %1337 = vmatprep.subr.mxu0 0.0
  %1338 = vmatpush1.msra.mxu0 0.0
  %1339 = vmatprep.subr.mxu0 0.0
  %1340 = vmatpush1.msra.mxu0 0.0
  %1341 = vmatprep.subr.mxu0 0.0
  %1342 = vmatpush1.msra.mxu0 0.0
  %1343 = vmatprep.subr.mxu0 0.0
  %1344 = vmatpush1.msra.mxu0 0.0
  %1345 = vmatprep.subr.mxu0 0.0
  %1346 = vmatpush1.msra.mxu0 0.0
  %1347 = vmatprep.subr.mxu0 0.0
  %1348 = vmatpush1.msra.mxu0 0.0
  %1349 = vmatprep.subr.mxu0 0.0
  %1350 = vmatpush1.msra.mxu0 0.0
  %1351 = vmatprep.subr.mxu0 0.0
  %1352 = vmatpush1.msra.mxu0 0.0
  %1353 = vmatprep.subr.mxu0 0.0
  %1354 = vmatpush1.msra.mxu0 0.0
  %1355 = vmatprep.subr.mxu0 0.0
  %1356 = vmatpush1.msra.mxu0 0.0
  %1357 = vmatprep.subr.mxu0 0.0
  %1358 = vmatpush1.msra.mxu0 0.0
  %1359 = vmatprep.subr.mxu0 0.0
  %1360 = vmatpush1.msra.mxu0 0.0
  %1361 = vmatprep.subr.mxu0 0.0
  %1362 = vmatpush1.msra.mxu0 0.0
  %1363 = vmatprep.subr.mxu0 0.0
  %1364 = vmatpush1.msra.mxu0 0.0
  %1365 = vmatprep.subr.mxu0 0.0
  %1366 = vmatpush1.msra.mxu0 0.0
  %1367 = vmatprep.subr.mxu0 0.0
  %1368 = vmatpush1.msra.mxu0 0.0
  %1369 = vmatprep.subr.mxu0 0.0
  %1370 = vmatpush1.msra.mxu0 0.0
  %1371 = vmatprep.subr.mxu0 0.0
  %1372 = vmatpush1.msra.mxu0 0.0
  %1373 = vmatprep.subr.mxu0 0.0
  %1374 = vmatpush1.msra.mxu0 0.0
  %1375 = vmatprep.subr.mxu0 0.0
  %1376 = vmatpush1.msra.mxu0 0.0
  %1377 = vmatprep.subr.mxu0 0.0
  %1378 = vmatpush1.msra.mxu0 0.0
  %1379 = vmatprep.subr.mxu0 0.0
  %1380 = vmatpush1.msra.mxu0 0.0
  %1381 = vmatprep.subr.mxu0 0.0
  %1382 = vmatpush1.msra.mxu0 0.0
  %1383 = vmatprep.subr.mxu0 0.0
  %1384 = vmatpush1.msra.mxu0 0.0
  %1385 = vmatprep.mubr.f32.mxu0 0.0
  %1386 = vmatmul.mubr.f32.gmra.mrb[0].mxu0 %v1319
  %v1387 = vpop.f32.mrb[0].mxu0
  %v1388 = vadd.f32 0.0, %v1387
  %v1389 = vpop.f32.mrb[0].mxu0
  %v1390 = vadd.f32 0.0, %v1389
  %1391 = vdwg.mxu0
  %v1394 = vcombine.low %v1388, %v1390
  %v1396 = vunpack.c.l.s4 1983009808
  %v1397 = vunpack.c.0.s8 %v1396
  %v1398 = vlaneseq
  %v1399 = vshrl.u32 %v1398, 7
  %v1400 = vsub.s32 %v1397, %v1399
  %v1401 = vrot.slane %v1394, %v1400
  %v1403 = vadd.f32 %v1317, %v1401
  %v1404 = vxor.u32 %v1403, 2147483648
  %v1405 = vmul.f32 %v1404, 1.442695
  %v1406 = vpow.pop %v1405
  %v1407 = vadd.f32 %v1406, 1.0
  %v1408 = vrcp.pop %v1407
  %v1409 = vmul.f32 1.0, %v1408
  %v1410 = vtanh.pop %v1403
  %v1411 = vmul.f32 %v1409, %v1176
  %1413 = vrot.lane.b32.xlu0 %v1410, 32
  %v1414 = vpop.permute.xlu0 %1413
  %v1416 = vmul.f32 %v1409, %v1414
  %1418 = vrot.lane.b32.xlu0 %v1416, 32
  %v1419 = vpop.permute.xlu0 %1418
  %v1421 = vadd.f32 %v1411, %v1419
  %v1422 = vtanh.pop %v1421
  %1424 = vrot.lane.b32.xlu0 %v1422, 32
  %v1425 = vpop.permute.xlu0 %1424
  %v1427 = vmul.f32 %v1409, %v1425
  %v1430 = vunpack.c.l.s4 1983009808
  %v1431 = vunpack.c.0.s8 %v1430
  %v1432 = vlaneseq
  %v1433 = vshrl.u32 %v1432, 7
  %v1434 = vsub.s32 %v1431, %v1433
  %v1435 = vrot.slane %v1427, %v1434
  %1436 = vrot.lane.b32.xlu0 %v1435, 64
  %v1437 = vpop.permute.xlu0 %1436
  %v1440 = vunpack.c.l.s4 1983009808
  %v1441 = vunpack.c.0.s8 %v1440
  %v1442 = vlaneseq
  %v1443 = vshrl.u32 %v1442, 7
  %v1444 = vsub.s32 %v1441, %v1443
  %v1445 = vrot.slane %v1410, %v1444
  %v1446 = vcombine.high %v1445, %v1445
  %1447 = vrot.lane.b32.xlu0 %v1446, 32
  %v1448 = vpop.permute.xlu0 %1447
  %v1450 = vsel %vm228, %v1437, %v1448
  %1452 = vrot.lane.b32.xlu0 %v1315, 64
  %v1453 = vpop.permute.xlu0 %1452
  %v1455 = vsel %vm95, %v1450, %v1453
  %1456 = vmatprep.subr.mxu0 %v42
  %1457 = vmatpush1.msra.mxu0 %v41
  %1458 = vmatprep.subr.mxu0 %v44
  %1459 = vmatpush1.msra.mxu0 %v43
  %1460 = vmatprep.subr.mxu0 %v46
  %1461 = vmatpush1.msra.mxu0 %v45
  %1462 = vmatprep.subr.mxu0 %v48
  %1463 = vmatpush1.msra.mxu0 %v47
  %1464 = vmatprep.subr.mxu0 %v50
  %1465 = vmatpush1.msra.mxu0 %v49
  %1466 = vmatprep.subr.mxu0 %v52
  %1467 = vmatpush1.msra.mxu0 %v51
  %1468 = vmatprep.subr.mxu0 %v54
  %1469 = vmatpush1.msra.mxu0 %v53
  %1470 = vmatprep.subr.mxu0 %v56
  %1471 = vmatpush1.msra.mxu0 %v55
  %1472 = vmatprep.subr.mxu0 %v58
  %1473 = vmatpush1.msra.mxu0 %v57
  %1474 = vmatprep.subr.mxu0 %v60
  %1475 = vmatpush1.msra.mxu0 %v59
  %1476 = vmatprep.subr.mxu0 %v62
  %1477 = vmatpush1.msra.mxu0 %v61
  %1478 = vmatprep.subr.mxu0 %v64
  %1479 = vmatpush1.msra.mxu0 %v63
  %1480 = vmatprep.subr.mxu0 %v66
  %1481 = vmatpush1.msra.mxu0 %v65
  %1482 = vmatprep.subr.mxu0 %v68
  %1483 = vmatpush1.msra.mxu0 %v67
  %1484 = vmatprep.subr.mxu0 %v70
  %1485 = vmatpush1.msra.mxu0 %v69
  %1486 = vmatprep.subr.mxu0 %v72
  %1487 = vmatpush1.msra.mxu0 %v71
  %1488 = vmatprep.subr.mxu0 0.0
  %1489 = vmatpush1.msra.mxu0 0.0
  %1490 = vmatprep.subr.mxu0 0.0
  %1491 = vmatpush1.msra.mxu0 0.0
  %1492 = vmatprep.subr.mxu0 0.0
  %1493 = vmatpush1.msra.mxu0 0.0
  %1494 = vmatprep.subr.mxu0 0.0
  %1495 = vmatpush1.msra.mxu0 0.0
  %1496 = vmatprep.subr.mxu0 0.0
  %1497 = vmatpush1.msra.mxu0 0.0
  %1498 = vmatprep.subr.mxu0 0.0
  %1499 = vmatpush1.msra.mxu0 0.0
  %1500 = vmatprep.subr.mxu0 0.0
  %1501 = vmatpush1.msra.mxu0 0.0
  %1502 = vmatprep.subr.mxu0 0.0
  %1503 = vmatpush1.msra.mxu0 0.0
  %1504 = vmatprep.subr.mxu0 0.0
  %1505 = vmatpush1.msra.mxu0 0.0
  %1506 = vmatprep.subr.mxu0 0.0
  %1507 = vmatpush1.msra.mxu0 0.0
  %1508 = vmatprep.subr.mxu0 0.0
  %1509 = vmatpush1.msra.mxu0 0.0
  %1510 = vmatprep.subr.mxu0 0.0
  %1511 = vmatpush1.msra.mxu0 0.0
  %1512 = vmatprep.subr.mxu0 0.0
  %1513 = vmatpush1.msra.mxu0 0.0
  %1514 = vmatprep.subr.mxu0 0.0
  %1515 = vmatpush1.msra.mxu0 0.0
  %1516 = vmatprep.subr.mxu0 0.0
  %1517 = vmatpush1.msra.mxu0 0.0
  %1518 = vmatprep.subr.mxu0 0.0
  %1519 = vmatpush1.msra.mxu0 0.0
  %1520 = vmatprep.mubr.f32.mxu0 0.0
  %1521 = vmatmul.mubr.f32.gmra.mrb[0].mxu0 %v1455
  %v1522 = vpop.f32.mrb[0].mxu0
  %v1523 = vadd.f32 %v78, %v1522
  %v1524 = vpop.f32.mrb[0].mxu0
  %v1525 = vadd.f32 %v82, %v1524
  %1526 = vdwg.mxu0
  %v1527 = vxor.u32 %v1523, 2147483648
  %v1528 = vmul.f32 %v1527, 1.442695
  %v1529 = vpow.pop %v1528
  %v1530 = vadd.f32 %v1529, 1.0
  %v1531 = vrcp.pop %v1530
  %v1532 = vmul.f32 1.0, %v1531
  %v1533 = vtanh.pop %v1523
  %v1534 = vtanh.pop %v1525
  %v1535 = vmul.f32 %v1532, %v1300
  %1537 = vrot.lane.b32.xlu0 %v1533, 32
  %v1538 = vpop.permute.xlu0 %1537
  %v1540 = vmul.f32 %v1532, %v1538
  %1542 = vrot.lane.b32.xlu0 %v1540, 32
  %v1543 = vpop.permute.xlu0 %1542
  %v1545 = vadd.f32 %v1535, %v1543
  %v1546 = vtanh.pop %v1545
  %1548 = vrot.lane.b32.xlu0 %v1546, 32
  %v1549 = vpop.permute.xlu0 %1548
  %v1551 = vmul.f32 %v1532, %v1549
  %1553 = vrot.lane.b32.xlu0 %v1551, 64
  %v1554 = vpop.permute.xlu0 %1553
  %1557 = vrot.lane.b32.xlu0 %v1534, 32
  %v1558 = vpop.permute.xlu0 %1557
  %v1560 = vsel %vm228, %v1554, %v1558
  %s1561 = scalar_lea.vmem %s0, 24
  %v1562 = vld [vmem:[%s1561] sm:$0xf]
  %v1564 = vsel %vm95, %v1450, 0
  %1566 = vmatprep.subr.mxu0 %v26
  %1567 = vmatpush1.msra.mxu0 %v25
  %1568 = vmatprep.subr.mxu0 %v28
  %1569 = vmatpush1.msra.mxu0 %v27
  %1570 = vmatprep.subr.mxu0 %v30
  %1571 = vmatpush1.msra.mxu0 %v29
  %1572 = vmatprep.subr.mxu0 %v32
  %1573 = vmatpush1.msra.mxu0 %v31
  %1574 = vmatprep.subr.mxu0 %v34
  %1575 = vmatpush1.msra.mxu0 %v33
  %1576 = vmatprep.subr.mxu0 %v36
  %1577 = vmatpush1.msra.mxu0 %v35
  %1578 = vmatprep.subr.mxu0 %v38
  %1579 = vmatpush1.msra.mxu0 %v37
  %1580 = vmatprep.subr.mxu0 %v40
  %1581 = vmatpush1.msra.mxu0 %v39
  %1582 = vmatprep.subr.mxu0 0.0
  %1583 = vmatpush1.msra.mxu0 0.0
  %1584 = vmatprep.subr.mxu0 0.0
  %1585 = vmatpush1.msra.mxu0 0.0
  %1586 = vmatprep.subr.mxu0 0.0
  %1587 = vmatpush1.msra.mxu0 0.0
  %1588 = vmatprep.subr.mxu0 0.0
  %1589 = vmatpush1.msra.mxu0 0.0
  %1590 = vmatprep.subr.mxu0 0.0
  %1591 = vmatpush1.msra.mxu0 0.0
  %1592 = vmatprep.subr.mxu0 0.0
  %1593 = vmatpush1.msra.mxu0 0.0
  %1594 = vmatprep.subr.mxu0 0.0
  %1595 = vmatpush1.msra.mxu0 0.0
  %1596 = vmatprep.subr.mxu0 0.0
  %1597 = vmatpush1.msra.mxu0 0.0
  %1598 = vmatprep.subr.mxu0 0.0
  %1599 = vmatpush1.msra.mxu0 0.0
  %1600 = vmatprep.subr.mxu0 0.0
  %1601 = vmatpush1.msra.mxu0 0.0
  %1602 = vmatprep.subr.mxu0 0.0
  %1603 = vmatpush1.msra.mxu0 0.0
  %1604 = vmatprep.subr.mxu0 0.0
  %1605 = vmatpush1.msra.mxu0 0.0
  %1606 = vmatprep.subr.mxu0 0.0
  %1607 = vmatpush1.msra.mxu0 0.0
  %1608 = vmatprep.subr.mxu0 0.0
  %1609 = vmatpush1.msra.mxu0 0.0
  %1610 = vmatprep.subr.mxu0 0.0
  %1611 = vmatpush1.msra.mxu0 0.0
  %1612 = vmatprep.subr.mxu0 0.0
  %1613 = vmatpush1.msra.mxu0 0.0
  %1614 = vmatprep.subr.mxu0 0.0
  %1615 = vmatpush1.msra.mxu0 0.0
  %1616 = vmatprep.subr.mxu0 0.0
  %1617 = vmatpush1.msra.mxu0 0.0
  %1618 = vmatprep.subr.mxu0 0.0
  %1619 = vmatpush1.msra.mxu0 0.0
  %1620 = vmatprep.subr.mxu0 0.0
  %1621 = vmatpush1.msra.mxu0 0.0
  %1622 = vmatprep.subr.mxu0 0.0
  %1623 = vmatpush1.msra.mxu0 0.0
  %1624 = vmatprep.subr.mxu0 0.0
  %1625 = vmatpush1.msra.mxu0 0.0
  %1626 = vmatprep.subr.mxu0 0.0
  %1627 = vmatpush1.msra.mxu0 0.0
  %1628 = vmatprep.subr.mxu0 0.0
  %1629 = vmatpush1.msra.mxu0 0.0
  %1630 = vmatprep.mubr.f32.mxu0 0.0
  %1631 = vmatmul.mubr.f32.gmra.mrb[0].mxu0 %v1564
  %v1632 = vpop.f32.mrb[0].mxu0
  %v1633 = vadd.f32 0.0, %v1632
  %v1634 = vpop.f32.mrb[0].mxu0
  %v1635 = vadd.f32 0.0, %v1634
  %1636 = vdwg.mxu0
  %v1639 = vcombine.low %v1633, %v1635
  %v1641 = vunpack.c.l.s4 1983009808
  %v1642 = vunpack.c.0.s8 %v1641
  %v1643 = vlaneseq
  %v1644 = vshrl.u32 %v1643, 7
  %v1645 = vsub.s32 %v1642, %v1644
  %v1646 = vrot.slane %v1639, %v1645
  %v1648 = vadd.f32 %v1562, %v1646
  %v1649 = vxor.u32 %v1648, 2147483648
  %v1650 = vmul.f32 %v1649, 1.442695
  %v1651 = vpow.pop %v1650
  %v1652 = vadd.f32 %v1651, 1.0
  %v1653 = vrcp.pop %v1652
  %v1654 = vmul.f32 1.0, %v1653
  %v1655 = vtanh.pop %v1648
  %v1656 = vmul.f32 %v1654, %v1421
  %1658 = vrot.lane.b32.xlu0 %v1655, 32
  %v1659 = vpop.permute.xlu0 %1658
  %v1661 = vmul.f32 %v1654, %v1659
  %1663 = vrot.lane.b32.xlu0 %v1661, 32
  %v1664 = vpop.permute.xlu0 %1663
  %v1666 = vadd.f32 %v1656, %v1664
  %v1667 = vtanh.pop %v1666
  %1669 = vrot.lane.b32.xlu0 %v1667, 32
  %v1670 = vpop.permute.xlu0 %1669
  %v1672 = vmul.f32 %v1654, %v1670
  %v1675 = vunpack.c.l.s4 1983009808
  %v1676 = vunpack.c.0.s8 %v1675
  %v1677 = vlaneseq
  %v1678 = vshrl.u32 %v1677, 7
  %v1679 = vsub.s32 %v1676, %v1678
  %v1680 = vrot.slane %v1672, %v1679
  %1681 = vrot.lane.b32.xlu0 %v1680, 64
  %v1682 = vpop.permute.xlu0 %1681
  %v1685 = vunpack.c.l.s4 1983009808
  %v1686 = vunpack.c.0.s8 %v1685
  %v1687 = vlaneseq
  %v1688 = vshrl.u32 %v1687, 7
  %v1689 = vsub.s32 %v1686, %v1688
  %v1690 = vrot.slane %v1655, %v1689
  %v1691 = vcombine.high %v1690, %v1690
  %1692 = vrot.lane.b32.xlu0 %v1691, 32
  %v1693 = vpop.permute.xlu0 %1692
  %v1695 = vsel %vm228, %v1682, %v1693
  %1697 = vrot.lane.b32.xlu0 %v1560, 64
  %v1698 = vpop.permute.xlu0 %1697
  %v1700 = vsel %vm95, %v1695, %v1698
  %1701 = vmatprep.subr.mxu0 %v42
  %1702 = vmatpush1.msra.mxu0 %v41
  %1703 = vmatprep.subr.mxu0 %v44
  %1704 = vmatpush1.msra.mxu0 %v43
  %1705 = vmatprep.subr.mxu0 %v46
  %1706 = vmatpush1.msra.mxu0 %v45
  %1707 = vmatprep.subr.mxu0 %v48
  %1708 = vmatpush1.msra.mxu0 %v47
  %1709 = vmatprep.subr.mxu0 %v50
  %1710 = vmatpush1.msra.mxu0 %v49
  %1711 = vmatprep.subr.mxu0 %v52
  %1712 = vmatpush1.msra.mxu0 %v51
  %1713 = vmatprep.subr.mxu0 %v54
  %1714 = vmatpush1.msra.mxu0 %v53
  %1715 = vmatprep.subr.mxu0 %v56
  %1716 = vmatpush1.msra.mxu0 %v55
  %1717 = vmatprep.subr.mxu0 %v58
  %1718 = vmatpush1.msra.mxu0 %v57
  %1719 = vmatprep.subr.mxu0 %v60
  %1720 = vmatpush1.msra.mxu0 %v59
  %1721 = vmatprep.subr.mxu0 %v62
  %1722 = vmatpush1.msra.mxu0 %v61
  %1723 = vmatprep.subr.mxu0 %v64
  %1724 = vmatpush1.msra.mxu0 %v63
  %1725 = vmatprep.subr.mxu0 %v66
  %1726 = vmatpush1.msra.mxu0 %v65
  %1727 = vmatprep.subr.mxu0 %v68
  %1728 = vmatpush1.msra.mxu0 %v67
  %1729 = vmatprep.subr.mxu0 %v70
  %1730 = vmatpush1.msra.mxu0 %v69
  %1731 = vmatprep.subr.mxu0 %v72
  %1732 = vmatpush1.msra.mxu0 %v71
  %1733 = vmatprep.subr.mxu0 0.0
  %1734 = vmatpush1.msra.mxu0 0.0
  %1735 = vmatprep.subr.mxu0 0.0
  %1736 = vmatpush1.msra.mxu0 0.0
  %1737 = vmatprep.subr.mxu0 0.0
  %1738 = vmatpush1.msra.mxu0 0.0
  %1739 = vmatprep.subr.mxu0 0.0
  %1740 = vmatpush1.msra.mxu0 0.0
  %1741 = vmatprep.subr.mxu0 0.0
  %1742 = vmatpush1.msra.mxu0 0.0
  %1743 = vmatprep.subr.mxu0 0.0
  %1744 = vmatpush1.msra.mxu0 0.0
  %1745 = vmatprep.subr.mxu0 0.0
  %1746 = vmatpush1.msra.mxu0 0.0
  %1747 = vmatprep.subr.mxu0 0.0
  %1748 = vmatpush1.msra.mxu0 0.0
  %1749 = vmatprep.subr.mxu0 0.0
  %1750 = vmatpush1.msra.mxu0 0.0
  %1751 = vmatprep.subr.mxu0 0.0
  %1752 = vmatpush1.msra.mxu0 0.0
  %1753 = vmatprep.subr.mxu0 0.0
  %1754 = vmatpush1.msra.mxu0 0.0
  %1755 = vmatprep.subr.mxu0 0.0
  %1756 = vmatpush1.msra.mxu0 0.0
  %1757 = vmatprep.subr.mxu0 0.0
  %1758 = vmatpush1.msra.mxu0 0.0
  %1759 = vmatprep.subr.mxu0 0.0
  %1760 = vmatpush1.msra.mxu0 0.0
  %1761 = vmatprep.subr.mxu0 0.0
  %1762 = vmatpush1.msra.mxu0 0.0
  %1763 = vmatprep.subr.mxu0 0.0
  %1764 = vmatpush1.msra.mxu0 0.0
  %1765 = vmatprep.mubr.f32.mxu0 0.0
  %1766 = vmatmul.mubr.f32.gmra.mrb[0].mxu0 %v1700
  %v1767 = vpop.f32.mrb[0].mxu0
  %v1768 = vadd.f32 %v78, %v1767
  %v1769 = vpop.f32.mrb[0].mxu0
  %v1770 = vadd.f32 %v82, %v1769
  %1771 = vdwg.mxu0
  %v1772 = vxor.u32 %v1768, 2147483648
  %v1773 = vmul.f32 %v1772, 1.442695
  %v1774 = vpow.pop %v1773
  %v1775 = vadd.f32 %v1774, 1.0
  %v1776 = vrcp.pop %v1775
  %v1777 = vmul.f32 1.0, %v1776
  %v1778 = vtanh.pop %v1768
  %v1779 = vtanh.pop %v1770
  %v1780 = vmul.f32 %v1777, %v1545
  %1782 = vrot.lane.b32.xlu0 %v1778, 32
  %v1783 = vpop.permute.xlu0 %1782
  %v1785 = vmul.f32 %v1777, %v1783
  %1787 = vrot.lane.b32.xlu0 %v1785, 32
  %v1788 = vpop.permute.xlu0 %1787
  %v1790 = vadd.f32 %v1780, %v1788
  %v1791 = vtanh.pop %v1790
  %1793 = vrot.lane.b32.xlu0 %v1791, 32
  %v1794 = vpop.permute.xlu0 %1793
  %v1796 = vmul.f32 %v1777, %v1794
  %1798 = vrot.lane.b32.xlu0 %v1796, 64
  %v1799 = vpop.permute.xlu0 %1798
  %1802 = vrot.lane.b32.xlu0 %v1779, 32
  %v1803 = vpop.permute.xlu0 %1802
  %v1805 = vsel %vm228, %v1799, %v1803
  %s1806 = scalar_lea.vmem %s0, 28
  %v1807 = vld [vmem:[%s1806] sm:$0xf]
  %v1809 = vsel %vm95, %v1695, 0
  %1811 = vmatprep.subr.mxu0 %v26
  %1812 = vmatpush1.msra.mxu0 %v25
  %1813 = vmatprep.subr.mxu0 %v28
  %1814 = vmatpush1.msra.mxu0 %v27
  %1815 = vmatprep.subr.mxu0 %v30
  %1816 = vmatpush1.msra.mxu0 %v29
  %1817 = vmatprep.subr.mxu0 %v32
  %1818 = vmatpush1.msra.mxu0 %v31
  %1819 = vmatprep.subr.mxu0 %v34
  %1820 = vmatpush1.msra.mxu0 %v33
  %1821 = vmatprep.subr.mxu0 %v36
  %1822 = vmatpush1.msra.mxu0 %v35
  %1823 = vmatprep.subr.mxu0 %v38
  %1824 = vmatpush1.msra.mxu0 %v37
  %1825 = vmatprep.subr.mxu0 %v40
  %1826 = vmatpush1.msra.mxu0 %v39
  %1827 = vmatprep.subr.mxu0 0.0
  %1828 = vmatpush1.msra.mxu0 0.0
  %1829 = vmatprep.subr.mxu0 0.0
  %1830 = vmatpush1.msra.mxu0 0.0
  %1831 = vmatprep.subr.mxu0 0.0
  %1832 = vmatpush1.msra.mxu0 0.0
  %1833 = vmatprep.subr.mxu0 0.0
  %1834 = vmatpush1.msra.mxu0 0.0
  %1835 = vmatprep.subr.mxu0 0.0
  %1836 = vmatpush1.msra.mxu0 0.0
  %1837 = vmatprep.subr.mxu0 0.0
  %1838 = vmatpush1.msra.mxu0 0.0
  %1839 = vmatprep.subr.mxu0 0.0
  %1840 = vmatpush1.msra.mxu0 0.0
  %1841 = vmatprep.subr.mxu0 0.0
  %1842 = vmatpush1.msra.mxu0 0.0
  %1843 = vmatprep.subr.mxu0 0.0
  %1844 = vmatpush1.msra.mxu0 0.0
  %1845 = vmatprep.subr.mxu0 0.0
  %1846 = vmatpush1.msra.mxu0 0.0
  %1847 = vmatprep.subr.mxu0 0.0
  %1848 = vmatpush1.msra.mxu0 0.0
  %1849 = vmatprep.subr.mxu0 0.0
  %1850 = vmatpush1.msra.mxu0 0.0
  %1851 = vmatprep.subr.mxu0 0.0
  %1852 = vmatpush1.msra.mxu0 0.0
  %1853 = vmatprep.subr.mxu0 0.0
  %1854 = vmatpush1.msra.mxu0 0.0
  %1855 = vmatprep.subr.mxu0 0.0
  %1856 = vmatpush1.msra.mxu0 0.0
  %1857 = vmatprep.subr.mxu0 0.0
  %1858 = vmatpush1.msra.mxu0 0.0
  %1859 = vmatprep.subr.mxu0 0.0
  %1860 = vmatpush1.msra.mxu0 0.0
  %1861 = vmatprep.subr.mxu0 0.0
  %1862 = vmatpush1.msra.mxu0 0.0
  %1863 = vmatprep.subr.mxu0 0.0
  %1864 = vmatpush1.msra.mxu0 0.0
  %1865 = vmatprep.subr.mxu0 0.0
  %1866 = vmatpush1.msra.mxu0 0.0
  %1867 = vmatprep.subr.mxu0 0.0
  %1868 = vmatpush1.msra.mxu0 0.0
  %1869 = vmatprep.subr.mxu0 0.0
  %1870 = vmatpush1.msra.mxu0 0.0
  %1871 = vmatprep.subr.mxu0 0.0
  %1872 = vmatpush1.msra.mxu0 0.0
  %1873 = vmatprep.subr.mxu0 0.0
  %1874 = vmatpush1.msra.mxu0 0.0
  %1875 = vmatprep.mubr.f32.mxu0 0.0
  %1876 = vmatmul.mubr.f32.gmra.mrb[0].mxu0 %v1809
  %v1877 = vpop.f32.mrb[0].mxu0
  %v1878 = vadd.f32 0.0, %v1877
  %v1879 = vpop.f32.mrb[0].mxu0
  %v1880 = vadd.f32 0.0, %v1879
  %1881 = vdwg.mxu0
  %v1884 = vcombine.low %v1878, %v1880
  %v1886 = vunpack.c.l.s4 1983009808
  %v1887 = vunpack.c.0.s8 %v1886
  %v1888 = vlaneseq
  %v1889 = vshrl.u32 %v1888, 7
  %v1890 = vsub.s32 %v1887, %v1889
  %v1891 = vrot.slane %v1884, %v1890
  %v1893 = vadd.f32 %v1807, %v1891
  %v1894 = vxor.u32 %v1893, 2147483648
  %v1895 = vmul.f32 %v1894, 1.442695
  %v1896 = vpow.pop %v1895
  %v1897 = vadd.f32 %v1896, 1.0
  %v1898 = vrcp.pop %v1897
  %v1899 = vmul.f32 1.0, %v1898
  %v1900 = vtanh.pop %v1893
  %v1901 = vmul.f32 %v1899, %v1666
  %1903 = vrot.lane.b32.xlu0 %v1900, 32
  %v1904 = vpop.permute.xlu0 %1903
  %v1906 = vmul.f32 %v1899, %v1904
  %1908 = vrot.lane.b32.xlu0 %v1906, 32
  %v1909 = vpop.permute.xlu0 %1908
  %v1911 = vadd.f32 %v1901, %v1909
  %v1912 = vtanh.pop %v1911
  %1914 = vrot.lane.b32.xlu0 %v1912, 32
  %v1915 = vpop.permute.xlu0 %1914
  %v1917 = vmul.f32 %v1899, %v1915
  %v1920 = vunpack.c.l.s4 1983009808
  %v1921 = vunpack.c.0.s8 %v1920
  %v1922 = vlaneseq
  %v1923 = vshrl.u32 %v1922, 7
  %v1924 = vsub.s32 %v1921, %v1923
  %v1925 = vrot.slane %v1917, %v1924
  %1926 = vrot.lane.b32.xlu0 %v1925, 64
  %v1927 = vpop.permute.xlu0 %1926
  %v1930 = vunpack.c.l.s4 1983009808
  %v1931 = vunpack.c.0.s8 %v1930
  %v1932 = vlaneseq
  %v1933 = vshrl.u32 %v1932, 7
  %v1934 = vsub.s32 %v1931, %v1933
  %v1935 = vrot.slane %v1900, %v1934
  %v1936 = vcombine.high %v1935, %v1935
  %1937 = vrot.lane.b32.xlu0 %v1936, 32
  %v1938 = vpop.permute.xlu0 %1937
  %v1940 = vsel %vm228, %v1927, %v1938
  %1942 = vrot.lane.b32.xlu0 %v1805, 64
  %v1943 = vpop.permute.xlu0 %1942
  %v1945 = vsel %vm95, %v1940, %v1943
  %1946 = vmatprep.subr.mxu0 %v42
  %1947 = vmatpush1.msra.mxu0 %v41
  %1948 = vmatprep.subr.mxu0 %v44
  %1949 = vmatpush1.msra.mxu0 %v43
  %1950 = vmatprep.subr.mxu0 %v46
  %1951 = vmatpush1.msra.mxu0 %v45
  %1952 = vmatprep.subr.mxu0 %v48
  %1953 = vmatpush1.msra.mxu0 %v47
  %1954 = vmatprep.subr.mxu0 %v50
  %1955 = vmatpush1.msra.mxu0 %v49
  %1956 = vmatprep.subr.mxu0 %v52
  %1957 = vmatpush1.msra.mxu0 %v51
  %1958 = vmatprep.subr.mxu0 %v54
  %1959 = vmatpush1.msra.mxu0 %v53
  %1960 = vmatprep.subr.mxu0 %v56
  %1961 = vmatpush1.msra.mxu0 %v55
  %1962 = vmatprep.subr.mxu0 %v58
  %1963 = vmatpush1.msra.mxu0 %v57
  %1964 = vmatprep.subr.mxu0 %v60
  %1965 = vmatpush1.msra.mxu0 %v59
  %1966 = vmatprep.subr.mxu0 %v62
  %1967 = vmatpush1.msra.mxu0 %v61
  %1968 = vmatprep.subr.mxu0 %v64
  %1969 = vmatpush1.msra.mxu0 %v63
  %1970 = vmatprep.subr.mxu0 %v66
  %1971 = vmatpush1.msra.mxu0 %v65
  %1972 = vmatprep.subr.mxu0 %v68
  %1973 = vmatpush1.msra.mxu0 %v67
  %1974 = vmatprep.subr.mxu0 %v70
  %1975 = vmatpush1.msra.mxu0 %v69
  %1976 = vmatprep.subr.mxu0 %v72
  %1977 = vmatpush1.msra.mxu0 %v71
  %1978 = vmatprep.subr.mxu0 0.0
  %1979 = vmatpush1.msra.mxu0 0.0
  %1980 = vmatprep.subr.mxu0 0.0
  %1981 = vmatpush1.msra.mxu0 0.0
  %1982 = vmatprep.subr.mxu0 0.0
  %1983 = vmatpush1.msra.mxu0 0.0
  %1984 = vmatprep.subr.mxu0 0.0
  %1985 = vmatpush1.msra.mxu0 0.0
  %1986 = vmatprep.subr.mxu0 0.0
  %1987 = vmatpush1.msra.mxu0 0.0
  %1988 = vmatprep.subr.mxu0 0.0
  %1989 = vmatpush1.msra.mxu0 0.0
  %1990 = vmatprep.subr.mxu0 0.0
  %1991 = vmatpush1.msra.mxu0 0.0
  %1992 = vmatprep.subr.mxu0 0.0
  %1993 = vmatpush1.msra.mxu0 0.0
  %1994 = vmatprep.subr.mxu0 0.0
  %1995 = vmatpush1.msra.mxu0 0.0
  %1996 = vmatprep.subr.mxu0 0.0
  %1997 = vmatpush1.msra.mxu0 0.0
  %1998 = vmatprep.subr.mxu0 0.0
  %1999 = vmatpush1.msra.mxu0 0.0
  %2000 = vmatprep.subr.mxu0 0.0
  %2001 = vmatpush1.msra.mxu0 0.0
  %2002 = vmatprep.subr.mxu0 0.0
  %2003 = vmatpush1.msra.mxu0 0.0
  %2004 = vmatprep.subr.mxu0 0.0
  %2005 = vmatpush1.msra.mxu0 0.0
  %2006 = vmatprep.subr.mxu0 0.0
  %2007 = vmatpush1.msra.mxu0 0.0
  %2008 = vmatprep.subr.mxu0 0.0
  %2009 = vmatpush1.msra.mxu0 0.0
  %2010 = vmatprep.mubr.f32.mxu0 0.0
  %2011 = vmatmul.mubr.f32.gmra.mrb[0].mxu0 %v1945
  %v2012 = vpop.f32.mrb[0].mxu0
  %v2013 = vadd.f32 %v78, %v2012
  %v2014 = vpop.f32.mrb[0].mxu0
  %v2015 = vadd.f32 %v82, %v2014
  %2016 = vdwg.mxu0
  %v2017 = vxor.u32 %v2013, 2147483648
  %v2018 = vmul.f32 %v2017, 1.442695
  %v2019 = vpow.pop %v2018
  %v2020 = vadd.f32 %v2019, 1.0
  %v2021 = vrcp.pop %v2020
  %v2022 = vmul.f32 1.0, %v2021
  %v2023 = vtanh.pop %v2013
  %v2024 = vtanh.pop %v2015
  %v2025 = vmul.f32 %v2022, %v1790
  %2027 = vrot.lane.b32.xlu0 %v2023, 32
  %v2028 = vpop.permute.xlu0 %2027
  %v2030 = vmul.f32 %v2022, %v2028
  %2032 = vrot.lane.b32.xlu0 %v2030, 32
  %v2033 = vpop.permute.xlu0 %2032
  %v2035 = vadd.f32 %v2025, %v2033
  %v2036 = vtanh.pop %v2035
  %2038 = vrot.lane.b32.xlu0 %v2036, 32
  %v2039 = vpop.permute.xlu0 %2038
  %v2041 = vmul.f32 %v2022, %v2039
  %2043 = vrot.lane.b32.xlu0 %v2041, 64
  %v2044 = vpop.permute.xlu0 %2043
  %2047 = vrot.lane.b32.xlu0 %v2024, 32
  %v2048 = vpop.permute.xlu0 %2047
  %v2050 = vsel %vm228, %v2044, %v2048
  %v2052 = vlaneseq
  %v2053 = vshrl.u32 %v2052, 7
  %v2054 = vsub.s32 0, %v2053
  %v2055 = vrot.slane %v93, %v2054
  %v2058 = vsel %vm95, %v2050, 0
  %2060 = vmatprep.subr.mxu0 0.0
  %2061 = vmatpush1.msra.mxu0 %v85
  %2062 = vmatprep.subr.mxu0 0.0
  %2063 = vmatpush1.msra.mxu0 %v86
  %2064 = vmatprep.subr.mxu0 0.0
  %2065 = vmatpush1.msra.mxu0 %v87
  %2066 = vmatprep.subr.mxu0 0.0
  %2067 = vmatpush1.msra.mxu0 %v88
  %2068 = vmatprep.subr.mxu0 0.0
  %2069 = vmatpush1.msra.mxu0 %v89
  %2070 = vmatprep.subr.mxu0 0.0
  %2071 = vmatpush1.msra.mxu0 %v90
  %2072 = vmatprep.subr.mxu0 0.0
  %2073 = vmatpush1.msra.mxu0 %v91
  %2074 = vmatprep.subr.mxu0 0.0
  %2075 = vmatpush1.msra.mxu0 %v92
  %2076 = vmatprep.subr.mxu0 0.0
  %2077 = vmatpush1.msra.mxu0 0.0
  %2078 = vmatprep.subr.mxu0 0.0
  %2079 = vmatpush1.msra.mxu0 0.0
  %2080 = vmatprep.subr.mxu0 0.0
  %2081 = vmatpush1.msra.mxu0 0.0
  %2082 = vmatprep.subr.mxu0 0.0
  %2083 = vmatpush1.msra.mxu0 0.0
  %2084 = vmatprep.subr.mxu0 0.0
  %2085 = vmatpush1.msra.mxu0 0.0
  %2086 = vmatprep.subr.mxu0 0.0
  %2087 = vmatpush1.msra.mxu0 0.0
  %2088 = vmatprep.subr.mxu0 0.0
  %2089 = vmatpush1.msra.mxu0 0.0
  %2090 = vmatprep.subr.mxu0 0.0
  %2091 = vmatpush1.msra.mxu0 0.0
  %2092 = vmatprep.subr.mxu0 0.0
  %2093 = vmatpush1.msra.mxu0 0.0
  %2094 = vmatprep.subr.mxu0 0.0
  %2095 = vmatpush1.msra.mxu0 0.0
  %2096 = vmatprep.subr.mxu0 0.0
  %2097 = vmatpush1.msra.mxu0 0.0
  %2098 = vmatprep.subr.mxu0 0.0
  %2099 = vmatpush1.msra.mxu0 0.0
  %2100 = vmatprep.subr.mxu0 0.0
  %2101 = vmatpush1.msra.mxu0 0.0
  %2102 = vmatprep.subr.mxu0 0.0
  %2103 = vmatpush1.msra.mxu0 0.0
  %2104 = vmatprep.subr.mxu0 0.0
  %2105 = vmatpush1.msra.mxu0 0.0
  %2106 = vmatprep.subr.mxu0 0.0
  %2107 = vmatpush1.msra.mxu0 0.0
  %2108 = vmatprep.subr.mxu0 0.0
  %2109 = vmatpush1.msra.mxu0 0.0
  %2110 = vmatprep.subr.mxu0 0.0
  %2111 = vmatpush1.msra.mxu0 0.0
  %2112 = vmatprep.subr.mxu0 0.0
  %2113 = vmatpush1.msra.mxu0 0.0
  %2114 = vmatprep.subr.mxu0 0.0
  %2115 = vmatpush1.msra.mxu0 0.0
  %2116 = vmatprep.subr.mxu0 0.0
  %2117 = vmatpush1.msra.mxu0 0.0
  %2118 = vmatprep.subr.mxu0 0.0
  %2119 = vmatpush1.msra.mxu0 0.0
  %2120 = vmatprep.subr.mxu0 0.0
  %2121 = vmatpush1.msra.mxu0 0.0
  %2122 = vmatprep.subr.mxu0 0.0
  %2123 = vmatpush1.msra.mxu0 0.0
  %2124 = vmatprep.mubr.f32.mxu0 0.0
  %2125 = vmatmul.mubr.f32.gmra.mrb[0].mxu0 %v2058
  %v2126 = vpop.f32.mrb[0].mxu0
  %v2127 = vadd.f32 %v2055, %v2126
  %v2128 = vpop.f32.mrb[0].mxu0
  %2129 = vdwg.mxu0
  %v2130 = vmax.f32 %v2127, 0.0
  %vm2131 = vcmask 1024
  %2132 = vst.msk [vmem:[%s6] sm:$0x3] %vm2131, %v2130
  // Predicated region
  $region26: #{ensemble_forward.1} parent=0 // pred_check
    _
  $region27: #{ensemble_forward.1} parent=0 // pred_check_branch
    %2134 = sbr.rel (0) target = $region29
  $region28: #{ensemble_forward.1} parent=0 // pred_region
    _
  $region29: #{ensemble_forward.1} parent=0 // pred_fallthru
    _
  // Predicated region
  $region30: #{ensemble_forward.1} parent=0 // pred_check
    _
  $region31: #{ensemble_forward.1} parent=0 // pred_check_branch
    %2136 = sbr.rel (0) target = $region33
  $region32: #{ensemble_forward.1} parent=0 // pred_region
    _
  $region33: #{ensemble_forward.1} parent=0 // pred_fallthru
    _

</llo_original>
